<compile_context>
chip_gen: v5e
topology: v5e:2x2
jax: 0.10.0
libtpu: 0.0.40
codegen_flags: <defaults>
</compile_context>

<pallas_src>
import math
import functools

import jax
import jax.numpy as jnp
import numpy as np
from jax.experimental import pallas as pl
from jax.experimental.pallas import tpu as pltpu


def _round_up(x, m):
    return ((x + m - 1) // m) * m


# ----------------------------------------------------------------------------
# in-kernel helpers
# ----------------------------------------------------------------------------
def _l2_normalize(x):
    # x / ||x||_2 along last dim.  rsqrt routes to the EUP slot; tiny eps
    # guards zero (padded) rows against 0/0 NaN.
    return x * jax.lax.rsqrt(jnp.sum(x * x, axis=-1, keepdims=True) + 1e-12)


# ----------------------------------------------------------------------------
# score kernel: tiled bf16 (TM, D) @ (D, TN) matmul, item add fused in-kernel
# ----------------------------------------------------------------------------
def _score_kernel(u_ref, it_ref, en_ref, out_ref):
    item_cf = it_ref[...] + en_ref[...]                      # (D, TN) bf16 (VPU filler)
    out_ref[...] = jnp.dot(u_ref[...], item_cf,
                           preferred_element_type=jnp.float32)


def score_pallas(user_bf16, item_t_bf16, entity_t_bf16):
    U, D = user_bf16.shape
    _, I = item_t_bf16.shape
    TM = min(512, _round_up(U, 16))      # sublane-friendly for bf16
    TN = min(1024, _round_up(I, 128))    # lane-dense output tiles
    U_pad = _round_up(U, TM)
    I_pad = _round_up(I, TN)
    u = jnp.pad(user_bf16, ((0, U_pad - U), (0, 0)))
    it = jnp.pad(item_t_bf16, ((0, 0), (0, I_pad - I)))
    en = jnp.pad(entity_t_bf16, ((0, 0), (0, I_pad - I)))
    grid = (U_pad // TM, I_pad // TN)

    cost = pl.CostEstimate(
        flops=2 * U_pad * I_pad * D + D * I_pad,
        transcendentals=0,
        bytes_accessed=U_pad * D * 2 + 2 * D * I_pad * 2 + U_pad * I_pad * 4,
    )
    out = pl.pallas_call(
        _score_kernel,
        grid=grid,
        in_specs=[
            pl.BlockSpec((TM, D), lambda i, j: (i, 0)),
            pl.BlockSpec((D, TN), lambda i, j: (0, j)),
            pl.BlockSpec((D, TN), lambda i, j: (0, j)),
        ],
        out_specs=pl.BlockSpec((TM, TN), lambda i, j: (i, j)),
        out_shape=jax.ShapeDtypeStruct((U_pad, I_pad), jnp.float32),
        compiler_params=pltpu.CompilerParams(
            dimension_semantics=("parallel", "parallel")),
        cost_estimate=cost,
    )(u, it, en)
    return out[:U, :I]


# ----------------------------------------------------------------------------
# CF (BPR) loss kernel — batch-tiled with running accumulators
# ----------------------------------------------------------------------------
def _cf_loss_kernel(u_ref, pi_ref, pe_ref, ni_ref, ne_ref, out_ref,
                    acc_bpr, acc_l2, *, l2_lambda, batch, tb):
    i = pl.program_id(0)

    @pl.when(i == 0)
    def _():
        acc_bpr[...] = jnp.zeros_like(acc_bpr)
        acc_l2[...] = jnp.zeros_like(acc_l2)

    row = i * tb + jax.lax.broadcasted_iota(jnp.int32, (tb, 1), 0)
    mask = (row < batch).astype(jnp.float32)                 # (tb, 1)

    u = u_ref[...]
    p = pi_ref[...] + pe_ref[...]                            # item + entity fused
    n = ni_ref[...] + ne_ref[...]

    pos_score = jnp.sum(u * p, axis=1, keepdims=True)        # (tb, 1)
    neg_score = jnp.sum(u * n, axis=1, keepdims=True)
    # matches torch reference: -log(1e-10 + sigmoid(pos - neg))
    bpr = -jnp.log(1e-10 + jax.nn.sigmoid(pos_score - neg_score))
    acc_bpr[...] += jnp.sum(bpr * mask, keepdims=True)

    l2 = 0.5 * (jnp.sum(u * u * mask, keepdims=True)
                + jnp.sum(p * p * mask, keepdims=True)
                + jnp.sum(n * n * mask, keepdims=True))
    acc_l2[...] += l2

    @pl.when(i == pl.num_programs(0) - 1)
    def _():
        inv_b = 1.0 / batch
        out_ref[...] = acc_bpr[...] * inv_b + l2_lambda * (acc_l2[...] * inv_b)


def cf_loss_pallas(u, pi, pe, ni, ne, l2_lambda):
    B, D = u.shape
    TB = min(256, _round_up(B, 8))
    B_pad = _round_up(B, TB)
    pad = lambda x: jnp.pad(x.astype(jnp.float32), ((0, B_pad - B), (0, 0)))
    arrays = [pad(x) for x in (u, pi, pe, ni, ne)]
    kernel = functools.partial(_cf_loss_kernel, l2_lambda=float(l2_lambda),
                               batch=B, tb=TB)
    out = pl.pallas_call(
        kernel,
        grid=(B_pad // TB,),
        in_specs=[pl.BlockSpec((TB, D), lambda i: (i, 0))] * 5,
        out_specs=pl.BlockSpec((1, 1), lambda i: (0, 0)),
        out_shape=jax.ShapeDtypeStruct((1, 1), jnp.float32),
        scratch_shapes=[pltpu.VMEM((1, 1), jnp.float32),
                        pltpu.VMEM((1, 1), jnp.float32)],
        compiler_params=pltpu.CompilerParams(dimension_semantics=("arbitrary",)),
    )(*arrays)
    return out[0, 0]


# ----------------------------------------------------------------------------
# TransR KG loss kernel — batch-tiled, projection on the MXU
# ----------------------------------------------------------------------------
def _transr_loss_kernel(r_ref, w_ref, h_ref, pt_ref, nt_ref, out_ref,
                        acc_kg, acc_l2, *, l2_lambda, batch, tb):
    i = pl.program_id(0)

    @pl.when(i == 0)
    def _():
        acc_kg[...] = jnp.zeros_like(acc_kg)
        acc_l2[...] = jnp.zeros_like(acc_l2)

    row = i * tb + jax.lax.broadcasted_iota(jnp.int32, (tb, 1, 1), 0)
    mask = (row < batch).astype(jnp.float32)                 # (tb, 1, 1)

    W = w_ref[...]                                           # (tb, D, R)
    r = r_ref[...]                                           # (tb, 1, R)
    h = h_ref[...]                                           # (tb, 1, D)
    pt = pt_ref[...]
    nt = nt_ref[...]

    # per-example TransR projection on the MXU: (tb,1,D) @ (tb,D,R) -> (tb,1,R)
    def proj(x):
        return jnp.einsum("bqd,bdr->bqr", x, W,
                          preferred_element_type=jnp.float32)

    r_mul_h = _l2_normalize(proj(h))
    r_mul_pt = _l2_normalize(proj(pt))
    r_mul_nt = _l2_normalize(proj(nt))
    r = _l2_normalize(r)

    dpos = r_mul_h + r - r_mul_pt
    dneg = r_mul_h + r - r_mul_nt
    pos_score = jnp.sum(dpos * dpos, axis=-1, keepdims=True)  # (tb, 1, 1)
    neg_score = jnp.sum(dneg * dneg, axis=-1, keepdims=True)

    kg = -jax.nn.log_sigmoid(neg_score - pos_score)
    acc_kg[...] += jnp.sum(kg * mask, keepdims=True)

    l2 = 0.5 * (jnp.sum(r_mul_h * r_mul_h * mask, keepdims=True)
                + jnp.sum(r * r * mask, keepdims=True)
                + jnp.sum(r_mul_pt * r_mul_pt * mask, keepdims=True)
                + jnp.sum(r_mul_nt * r_mul_nt * mask, keepdims=True))
    acc_l2[...] += l2

    @pl.when(i == pl.num_programs(0) - 1)
    def _():
        inv_b = 1.0 / batch
        out_ref[...] = acc_kg[...] * inv_b + l2_lambda * (acc_l2[...] * inv_b)


def transr_loss_pallas(r_e, W_r, h_e, pt_e, nt_e, l2_lambda):
    # r_e: (B,1,R)  W_r: (B,D,R)  h_e/pt_e/nt_e: (B,1,D)
    B = h_e.shape[0]
    D = h_e.shape[-1]
    R = r_e.shape[-1]
    TB = min(256, _round_up(B, 8))
    B_pad = _round_up(B, TB)
    padb = lambda x: jnp.pad(x.astype(jnp.float32),
                             ((0, B_pad - B),) + ((0, 0),) * (x.ndim - 1))
    r_e, W_r, h_e, pt_e, nt_e = map(padb, (r_e, W_r, h_e, pt_e, nt_e))
    kernel = functools.partial(_transr_loss_kernel, l2_lambda=float(l2_lambda),
                               batch=B, tb=TB)
    out = pl.pallas_call(
        kernel,
        grid=(B_pad // TB,),
        in_specs=[
            pl.BlockSpec((TB, 1, R), lambda i: (i, 0, 0)),
            pl.BlockSpec((TB, D, R), lambda i: (i, 0, 0)),
            pl.BlockSpec((TB, 1, D), lambda i: (i, 0, 0)),
            pl.BlockSpec((TB, 1, D), lambda i: (i, 0, 0)),
            pl.BlockSpec((TB, 1, D), lambda i: (i, 0, 0)),
        ],
        out_specs=pl.BlockSpec((1, 1, 1), lambda i: (0, 0, 0)),
        out_shape=jax.ShapeDtypeStruct((1, 1, 1), jnp.float32),
        scratch_shapes=[pltpu.VMEM((1, 1, 1), jnp.float32),
                        pltpu.VMEM((1, 1, 1), jnp.float32)],
        compiler_params=pltpu.CompilerParams(dimension_semantics=("arbitrary",)),
    )(r_e, W_r, h_e, pt_e, nt_e)
    return out[0, 0, 0]


# ----------------------------------------------------------------------------
# TransE KG loss kernel — batch-tiled
# ----------------------------------------------------------------------------
def _transe_loss_kernel(r_ref, h_ref, pt_ref, nt_ref, out_ref,
                        acc_kg, acc_l2, *, l2_lambda, batch, tb):
    i = pl.program_id(0)

    @pl.when(i == 0)
    def _():
        acc_kg[...] = jnp.zeros_like(acc_kg)
        acc_l2[...] = jnp.zeros_like(acc_l2)

    row = i * tb + jax.lax.broadcasted_iota(jnp.int32, (tb, 1), 0)
    mask = (row < batch).astype(jnp.float32)                 # (tb, 1)

    r = _l2_normalize(r_ref[...])
    h = _l2_normalize(h_ref[...])
    pt = _l2_normalize(pt_ref[...])
    nt = _l2_normalize(nt_ref[...])

    dpos = h + r - pt
    dneg = h + r - nt
    pos_score = jnp.sum(dpos * dpos, axis=-1, keepdims=True)
    neg_score = jnp.sum(dneg * dneg, axis=-1, keepdims=True)

    # NOTE: the torch reference uses sigmoid(pos - neg) for TransE (opposite
    # sign convention from TransR); kept verbatim for semantic fidelity.
    kg = -jnp.log(1e-10 + jax.nn.sigmoid(pos_score - neg_score))
    acc_kg[...] += jnp.sum(kg * mask, keepdims=True)

    l2 = 0.5 * (jnp.sum(h * h * mask, keepdims=True)
                + jnp.sum(r * r * mask, keepdims=True)
                + jnp.sum(pt * pt * mask, keepdims=True)
                + jnp.sum(nt * nt * mask, keepdims=True))
    acc_l2[...] += l2

    @pl.when(i == pl.num_programs(0) - 1)
    def _():
        inv_b = 1.0 / batch
        out_ref[...] = acc_kg[...] * inv_b + l2_lambda * (acc_l2[...] * inv_b)


def transe_loss_pallas(r_e, h_e, pt_e, nt_e, l2_lambda):
    B, D = h_e.shape
    R = r_e.shape[-1]
    TB = min(256, _round_up(B, 8))
    B_pad = _round_up(B, TB)
    pad = lambda x: jnp.pad(x.astype(jnp.float32), ((0, B_pad - B), (0, 0)))
    r_e, h_e, pt_e, nt_e = map(pad, (r_e, h_e, pt_e, nt_e))
    kernel = functools.partial(_transe_loss_kernel, l2_lambda=float(l2_lambda),
                               batch=B, tb=TB)
    out = pl.pallas_call(
        kernel,
        grid=(B_pad // TB,),
        in_specs=[
            pl.BlockSpec((TB, R), lambda i: (i, 0)),
            pl.BlockSpec((TB, D), lambda i: (i, 0)),
            pl.BlockSpec((TB, D), lambda i: (i, 0)),
            pl.BlockSpec((TB, D), lambda i: (i, 0)),
        ],
        out_specs=pl.BlockSpec((1, 1), lambda i: (0, 0)),
        out_shape=jax.ShapeDtypeStruct((1, 1), jnp.float32),
        scratch_shapes=[pltpu.VMEM((1, 1), jnp.float32),
                        pltpu.VMEM((1, 1), jnp.float32)],
        compiler_params=pltpu.CompilerParams(dimension_semantics=("arbitrary",)),
    )(r_e, h_e, pt_e, nt_e)
    return out[0, 0]


# ----------------------------------------------------------------------------
# parameter init (PyTorch xavier_uniform_ semantics)
# ----------------------------------------------------------------------------
def xavier_uniform(key, shape):
    if len(shape) == 2:
        fan_in, fan_out = shape[1], shape[0]
    else:
        receptive = int(np.prod(shape[2:]))
        fan_in = shape[1] * receptive
        fan_out = shape[0] * receptive
    bound = math.sqrt(6.0 / (fan_in + fan_out))
    return jax.random.uniform(key, shape, jnp.float32, -bound, bound)


class EmbeddingBasedPallas:
    def __init__(self, key, n_users, n_items, n_entities, n_relations,
                 embed_dim, relation_dim, cf_l2loss_lambda, kg_l2loss_lambda,
                 kg_embedding_type="TransR"):
        self.n_users = n_users
        self.n_items = n_items
        self.n_entities = n_entities
        self.n_relations = n_relations
        self.embed_dim = embed_dim
        self.relation_dim = relation_dim
        self.cf_l2loss_lambda = float(cf_l2loss_lambda)
        self.kg_l2loss_lambda = float(kg_l2loss_lambda)
        self.KG_embedding_type = kg_embedding_type

        ks = jax.random.split(key, 5)
        self.user_embed = xavier_uniform(ks[0], (n_users, embed_dim))
        self.item_embed = xavier_uniform(ks[1], (n_items, embed_dim))
        self.entity_embed = xavier_uniform(ks[2], (n_entities, embed_dim))
        self.relation_embed = xavier_uniform(ks[3], (n_relations, relation_dim))
        self.trans_M = xavier_uniform(ks[4], (n_relations, embed_dim, relation_dim))

    # ---- KG losses -----------------------------------------------------
    def calc_kg_loss_TransR(self, h, r, pos_t, neg_t):
        r_embed = self.relation_embed[r][:, None, :]       # (B, 1, R)
        W_r = self.trans_M[r]                              # (B, D, R)
        h_embed = self.entity_embed[h][:, None, :]         # (B, 1, D)
        pos_t_embed = self.entity_embed[pos_t][:, None, :]
        neg_t_embed = self.entity_embed[neg_t][:, None, :]
        return transr_loss_pallas(r_embed, W_r, h_embed, pos_t_embed,
                                  neg_t_embed, self.kg_l2loss_lambda)

    def calc_kg_loss_TransE(self, h, r, pos_t, neg_t):
        r_embed = self.relation_embed[r]
        h_embed = self.entity_embed[h]
        pos_t_embed = self.entity_embed[pos_t]
        neg_t_embed = self.entity_embed[neg_t]
        return transe_loss_pallas(r_embed, h_embed, pos_t_embed, neg_t_embed,
                                  self.kg_l2loss_lambda)

    # ---- CF loss -------------------------------------------------------
    def calc_cf_loss(self, user_ids, item_pos_ids, item_neg_ids):
        u = self.user_embed[user_ids]
        pi = self.item_embed[item_pos_ids]
        pe = self.entity_embed[item_pos_ids]
        ni = self.item_embed[item_neg_ids]
        ne = self.entity_embed[item_neg_ids]
        return cf_loss_pallas(u, pi, pe, ni, ne, self.cf_l2loss_lambda)

    def calc_loss(self, user_ids, item_pos_ids, item_neg_ids, h, r, pos_t, neg_t):
        if self.KG_embedding_type == "TransR":
            kg_loss = self.calc_kg_loss_TransR(h, r, pos_t, neg_t)
        else:
            kg_loss = self.calc_kg_loss_TransE(h, r, pos_t, neg_t)
        cf_loss = self.calc_cf_loss(user_ids, item_pos_ids, item_neg_ids)
        return kg_loss + cf_loss

    # ---- scoring -------------------------------------------------------
    def calc_score(self, user_ids, item_ids):
        user_embed = self.user_embed[user_ids].astype(jnp.bfloat16)
        # layout plumbing: pre-transpose to (D, I) so the kernel is (M,K)@(K,N)
        item_t = self.item_embed[item_ids].astype(jnp.bfloat16).T
        entity_t = self.entity_embed[item_ids].astype(jnp.bfloat16).T
        return score_pallas(user_embed, item_t, entity_t)

    def forward(self, *inputs, mode):
        if mode == "train_cf&kg":
            return self.calc_loss(*inputs)
        if mode == "train_cf":
            return self.calc_cf_loss(*inputs)
        if mode == "TransR":
            return self.calc_kg_loss_TransR(*inputs)
        if mode == "TransE":
            return self.calc_kg_loss_TransE(*inputs)
        return self.calc_score(*inputs)


# ----------------------------------------------------------------------------
# pure-JAX references (mirror the torch module) for sanity checking
# ----------------------------------------------------------------------------
def _ref_l2_loss_mean(x):
    return jnp.mean(jnp.sum(x * x, axis=1) / 2.0)


def _ref_cf_loss(m, uid, pid, nid):
    u = m.user_embed[uid]
    p = m.entity_embed[pid] + m.item_embed[pid]
    n = m.entity_embed[nid] + m.item_embed[nid]
    pos = jnp.sum(u * p, axis=1)
    neg = jnp.sum(u * n, axis=1)
    cf = jnp.mean(-jnp.log(1e-10 + jax.nn.sigmoid(pos - neg)))
    l2 = _ref_l2_loss_mean(u) + _ref_l2_loss_mean(p) + _ref_l2_loss_mean(n)
    return cf + m.cf_l2loss_lambda * l2


def _ref_transr(m, h, r, pos_t, neg_t):
    r_e = m.relation_embed[r]
    W = m.trans_M[r]
    h_e = m.entity_embed[h]
    pt = m.entity_embed[pos_t]
    nt = m.entity_embed[neg_t]
    mh = jnp.einsum("bd,bdr->br", h_e, W)
    mp = jnp.einsum("bd,bdr->br", pt, W)
    mn = jnp.einsum("bd,bdr->br", nt, W)
    nrm = lambda x: x / jnp.linalg.norm(x, axis=-1, keepdims=True)
    r_e, mh, mp, mn = nrm(r_e), nrm(mh), nrm(mp), nrm(mn)
    pos = jnp.sum((mh + r_e - mp) ** 2, axis=-1)
    neg = jnp.sum((mh + r_e - mn) ** 2, axis=-1)
    kg = jnp.mean(-jax.nn.log_sigmoid(neg - pos))
    l2 = (_ref_l2_loss_mean(mh) + _ref_l2_loss_mean(r_e)
          + _ref_l2_loss_mean(mp) + _ref_l2_loss_mean(mn))
    return kg + m.kg_l2loss_lambda * l2


def _ref_transe(m, h, r, pos_t, neg_t):
    nrm = lambda x: x / jnp.linalg.norm(x, axis=-1, keepdims=True)
    r_e = nrm(m.relation_embed[r])
    h_e = nrm(m.entity_embed[h])
    pt = nrm(m.entity_embed[pos_t])
    nt = nrm(m.entity_embed[neg_t])
    pos = jnp.sum((h_e + r_e - pt) ** 2, axis=-1)
    neg = jnp.sum((h_e + r_e - nt) ** 2, axis=-1)
    kg = jnp.mean(-jnp.log(1e-10 + jax.nn.sigmoid(pos - neg)))
    l2 = (_ref_l2_loss_mean(h_e) + _ref_l2_loss_mean(r_e)
          + _ref_l2_loss_mean(pt) + _ref_l2_loss_mean(nt))
    return kg + m.kg_l2loss_lambda * l2


def _ref_score(m, uid, iid):
    u = m.user_embed[uid]
    it = m.item_embed[iid] + m.entity_embed[iid]
    return u @ it.T


# ----------------------------------------------------------------------------
# main
# ----------------------------------------------------------------------------
if __name__ == "__main__":
    key = jax.random.PRNGKey(0)
    k_param, k_cf, k_kg = jax.random.split(key, 3)

    n_users, n_items, n_entities, n_relations = 16, 16, 16, 4
    embed_dim, relation_dim = 32, 32
    cf_batch, kg_batch = 8, 8

    model = EmbeddingBasedPallas(
        k_param, n_users, n_items, n_entities, n_relations,
        embed_dim, relation_dim,
        cf_l2loss_lambda=1e-4, kg_l2loss_lambda=1e-4,
        kg_embedding_type="TransR",
    )

    kc = jax.random.split(k_cf, 3)
    user_ids = jax.random.randint(kc[0], (cf_batch,), 0, n_users)
    item_pos_ids = jax.random.randint(kc[1], (cf_batch,), 0, n_items)
    item_neg_ids = jax.random.randint(kc[2], (cf_batch,), 0, n_items)

    kk = jax.random.split(k_kg, 4)
    h = jax.random.randint(kk[0], (kg_batch,), 0, n_entities)
    r = jax.random.randint(kk[1], (kg_batch,), 0, n_relations)
    pos_t = jax.random.randint(kk[2], (kg_batch,), 0, n_entities)
    neg_t = jax.random.randint(kk[3], (kg_batch,), 0, n_entities)

    all_user_ids = jnp.arange(n_users, dtype=jnp.int32)
    all_item_ids = jnp.arange(n_items, dtype=jnp.int32)

    # run every forward mode once
    loss_all = model.forward(user_ids, item_pos_ids, item_neg_ids,
                             h, r, pos_t, neg_t, mode="train_cf&kg")
    loss_cf = model.forward(user_ids, item_pos_ids, item_neg_ids, mode="train_cf")
    loss_r = model.forward(h, r, pos_t, neg_t, mode="TransR")
    loss_e = model.forward(h, r, pos_t, neg_t, mode="TransE")
    scores = model.forward(all_user_ids, all_item_ids, mode="predict")

    jax.block_until_ready((loss_all, loss_cf, loss_r, loss_e, scores))

    # shape / finiteness checks
    assert scores.shape == (n_users, n_items)
    for v in (loss_all, loss_cf, loss_r, loss_e):
        assert jnp.isfinite(v)

    # numerical checks against pure-JAX references of the torch module
    ref_cf = _ref_cf_loss(model, user_ids, item_pos_ids, item_neg_ids)
    ref_r = _ref_transr(model, h, r, pos_t, neg_t)
    ref_e = _ref_transe(model, h, r, pos_t, neg_t)
    ref_s = _ref_score(model, all_user_ids, all_item_ids)

    assert jnp.allclose(loss_cf, ref_cf, rtol=1e-2, atol=1e-2)
    assert jnp.allclose(loss_r, ref_r, rtol=1e-2, atol=1e-2)
    assert jnp.allclose(loss_e, ref_e, rtol=1e-2, atol=1e-2)
    assert jnp.allclose(loss_all, ref_r + ref_cf, rtol=1e-2, atol=1e-2)
    assert jnp.allclose(scores, ref_s, rtol=5e-2, atol=5e-2)  # bf16 matmul path

    print("KERNEL_OK")
</pallas_src>

<mosaic_0001>
module attributes {stable_mosaic.version = 11 : i64} {
  func.func @_transr_loss_kernel(%arg0: i32, %arg1: memref<8x1x32xf32, #tpu.memory_space<vmem>>, %arg2: memref<8x32x32xf32, #tpu.memory_space<vmem>>, %arg3: memref<8x1x32xf32, #tpu.memory_space<vmem>>, %arg4: memref<8x1x32xf32, #tpu.memory_space<vmem>>, %arg5: memref<8x1x32xf32, #tpu.memory_space<vmem>>, %arg6: memref<1x1x1xf32, #tpu.memory_space<vmem>>, %arg7: memref<1x1x1xf32, #tpu.memory_space<vmem>>, %arg8: memref<1x1x1xf32, #tpu.memory_space<vmem>>) attributes {dimension_semantics = [#tpu.dimension_semantics<arbitrary>], iteration_bounds = array<i64: 1>, scalar_prefetch = 0 : i64, scratch_operands = 2 : i64, tpu.core_type = #tpu.core_type<tc>, window_params = [{transform_indices = @transform_0, window_bounds = array<i64: 8, 1, 32>}, {transform_indices = @transform_1, window_bounds = array<i64: 8, 32, 32>}, {transform_indices = @transform_2, window_bounds = array<i64: 8, 1, 32>}, {transform_indices = @transform_3, window_bounds = array<i64: 8, 1, 32>}, {transform_indices = @transform_4, window_bounds = array<i64: 8, 1, 32>}, {pipeline_mode = #tpu.pipeline_mode<synchronous>, transform_indices = @transform_5, window_bounds = array<i64: 1, 1, 1>}]} {
    %c0_i32 = arith.constant 0 : i32
    %0 = arith.cmpi eq, %arg0, %c0_i32 : i32
    %1 = arith.extui %0 : i1 to i32
    %c0_i32_0 = arith.constant 0 : i32
    %2 = arith.cmpi ne, %1, %c0_i32_0 : i32
    scf.if %2 {
      %cst_53 = arith.constant 0.000000e+00 : f32
      %134 = vector.broadcast %cst_53 : f32 to vector<1x1x1xf32>
      %c0_54 = arith.constant 0 : index
      %c0_55 = arith.constant 0 : index
      %c0_56 = arith.constant 0 : index
      %135 = vector.load %arg7[%c0_54, %c0_55, %c0_56] : memref<1x1x1xf32, #tpu.memory_space<vmem>>, vector<1x1x1xf32>
      tpu.vector_store %arg7[%c0_54, %c0_55, %c0_56], %134 {strides = array<i32>} : memref<1x1x1xf32, #tpu.memory_space<vmem>>, vector<1x1x1xf32>,
      %cst_57 = arith.constant 0.000000e+00 : f32
      %136 = vector.broadcast %cst_57 : f32 to vector<1x1x1xf32>
      %c0_58 = arith.constant 0 : index
      %c0_59 = arith.constant 0 : index
      %c0_60 = arith.constant 0 : index
      %137 = vector.load %arg8[%c0_58, %c0_59, %c0_60] : memref<1x1x1xf32, #tpu.memory_space<vmem>>, vector<1x1x1xf32>
      tpu.vector_store %arg8[%c0_58, %c0_59, %c0_60], %136 {strides = array<i32>} : memref<1x1x1xf32, #tpu.memory_space<vmem>>, vector<1x1x1xf32>,
    } else {
    }
    %c8_i32 = arith.constant 8 : i32
    %3 = arith.muli %arg0, %c8_i32 : i32
    %4 = tpu.iota {dimensions = array<i32: 0>} : vector<8x1x1xi32>
    %5 = vector.broadcast %3 : i32 to vector<8x1x1xi32>
    %6 = arith.addi %5, %4 : vector<8x1x1xi32>
    %c8_i32_1 = arith.constant 8 : i32
    %7 = vector.broadcast %c8_i32_1 : i32 to vector<8x1x1xi32>
    %8 = arith.cmpi slt, %6, %7 : vector<8x1x1xi32>
    %9 = arith.extui %8 : vector<8x1x1xi1> to vector<8x1x1xi32>
    %10 = arith.sitofp %9 : vector<8x1x1xi32> to vector<8x1x1xf32>
    %c0 = arith.constant 0 : index
    %c0_2 = arith.constant 0 : index
    %c0_3 = arith.constant 0 : index
    %11 = vector.load %arg2[%c0, %c0_2, %c0_3] : memref<8x32x32xf32, #tpu.memory_space<vmem>>, vector<8x32x32xf32>
    %c0_4 = arith.constant 0 : index
    %c0_5 = arith.constant 0 : index
    %c0_6 = arith.constant 0 : index
    %12 = vector.load %arg1[%c0_4, %c0_5, %c0_6] : memref<8x1x32xf32, #tpu.memory_space<vmem>>, vector<8x1x32xf32>
    %c0_7 = arith.constant 0 : index
    %c0_8 = arith.constant 0 : index
    %c0_9 = arith.constant 0 : index
    %13 = vector.load %arg3[%c0_7, %c0_8, %c0_9] : memref<8x1x32xf32, #tpu.memory_space<vmem>>, vector<8x1x32xf32>
    %c0_10 = arith.constant 0 : index
    %c0_11 = arith.constant 0 : index
    %c0_12 = arith.constant 0 : index
    %14 = vector.load %arg4[%c0_10, %c0_11, %c0_12] : memref<8x1x32xf32, #tpu.memory_space<vmem>>, vector<8x1x32xf32>
    %c0_13 = arith.constant 0 : index
    %c0_14 = arith.constant 0 : index
    %c0_15 = arith.constant 0 : index
    %15 = vector.load %arg5[%c0_13, %c0_14, %c0_15] : memref<8x1x32xf32, #tpu.memory_space<vmem>>, vector<8x1x32xf32>
    "tpu.trace_start"() <{level = 10 : i32, message = "bqd,bdr->bqr"}> : () -> ()
    %cst = arith.constant dense<0.000000e+00> : vector<8x1x32xf32>
    %16 = tpu.matmul %13, %11, %cst {dimension_numbers = #tpu.dot_dimension_numbers<[2], [1], [1], [2], [0, 0, 0, 1, 1, 2], [0], [0]>} : vector<8x1x32xf32>, vector<8x32x32xf32>, vector<8x1x32xf32> -> vector<8x1x32xf32>
    "tpu.trace_stop"() : () -> ()
    %17 = arith.mulf %16, %16 : vector<8x1x32xf32>
    %cst_16 = arith.constant dense<0.000000e+00> : vector<8x1xf32>
    %18 = vector.multi_reduction <add>, %17, %cst_16 [2] : vector<8x1x32xf32> to vector<8x1xf32>
    %19 = vector.shape_cast %18 : vector<8x1xf32> to vector<8x1x1xf32>
    %cst_17 = arith.constant 9.99999996E-13 : f32
    %20 = vector.broadcast %cst_17 : f32 to vector<8x1x1xf32>
    %21 = arith.addf %19, %20 : vector<8x1x1xf32>
    %22 = math.rsqrt %21 : vector<8x1x1xf32>
    %23 = vector.broadcast %22 : vector<8x1x1xf32> to vector<8x1x32xf32>
    %24 = arith.mulf %16, %23 : vector<8x1x32xf32>
    "tpu.trace_start"() <{level = 10 : i32, message = "bqd,bdr->bqr"}> : () -> ()
    %cst_18 = arith.constant dense<0.000000e+00> : vector<8x1x32xf32>
    %25 = tpu.matmul %14, %11, %cst_18 {dimension_numbers = #tpu.dot_dimension_numbers<[2], [1], [1], [2], [0, 0, 0, 1, 1, 2], [0], [0]>} : vector<8x1x32xf32>, vector<8x32x32xf32>, vector<8x1x32xf32> -> vector<8x1x32xf32>
    "tpu.trace_stop"() : () -> ()
    %26 = arith.mulf %25, %25 : vector<8x1x32xf32>
    %cst_19 = arith.constant dense<0.000000e+00> : vector<8x1xf32>
    %27 = vector.multi_reduction <add>, %26, %cst_19 [2] : vector<8x1x32xf32> to vector<8x1xf32>
    %28 = vector.shape_cast %27 : vector<8x1xf32> to vector<8x1x1xf32>
    %cst_20 = arith.constant 9.99999996E-13 : f32
    %29 = vector.broadcast %cst_20 : f32 to vector<8x1x1xf32>
    %30 = arith.addf %28, %29 : vector<8x1x1xf32>
    %31 = math.rsqrt %30 : vector<8x1x1xf32>
    %32 = vector.broadcast %31 : vector<8x1x1xf32> to vector<8x1x32xf32>
    %33 = arith.mulf %25, %32 : vector<8x1x32xf32>
    "tpu.trace_start"() <{level = 10 : i32, message = "bqd,bdr->bqr"}> : () -> ()
    %cst_21 = arith.constant dense<0.000000e+00> : vector<8x1x32xf32>
    %34 = tpu.matmul %15, %11, %cst_21 {dimension_numbers = #tpu.dot_dimension_numbers<[2], [1], [1], [2], [0, 0, 0, 1, 1, 2], [0], [0]>} : vector<8x1x32xf32>, vector<8x32x32xf32>, vector<8x1x32xf32> -> vector<8x1x32xf32>
    "tpu.trace_stop"() : () -> ()
    %35 = arith.mulf %34, %34 : vector<8x1x32xf32>
    %cst_22 = arith.constant dense<0.000000e+00> : vector<8x1xf32>
    %36 = vector.multi_reduction <add>, %35, %cst_22 [2] : vector<8x1x32xf32> to vector<8x1xf32>
    %37 = vector.shape_cast %36 : vector<8x1xf32> to vector<8x1x1xf32>
    %cst_23 = arith.constant 9.99999996E-13 : f32
    %38 = vector.broadcast %cst_23 : f32 to vector<8x1x1xf32>
    %39 = arith.addf %37, %38 : vector<8x1x1xf32>
    %40 = math.rsqrt %39 : vector<8x1x1xf32>
    %41 = vector.broadcast %40 : vector<8x1x1xf32> to vector<8x1x32xf32>
    %42 = arith.mulf %34, %41 : vector<8x1x32xf32>
    %43 = arith.mulf %12, %12 : vector<8x1x32xf32>
    %cst_24 = arith.constant dense<0.000000e+00> : vector<8x1xf32>
    %44 = vector.multi_reduction <add>, %43, %cst_24 [2] : vector<8x1x32xf32> to vector<8x1xf32>
    %45 = vector.shape_cast %44 : vector<8x1xf32> to vector<8x1x1xf32>
    %cst_25 = arith.constant 9.99999996E-13 : f32
    %46 = vector.broadcast %cst_25 : f32 to vector<8x1x1xf32>
    %47 = arith.addf %45, %46 : vector<8x1x1xf32>
    %48 = math.rsqrt %47 : vector<8x1x1xf32>
    %49 = vector.broadcast %48 : vector<8x1x1xf32> to vector<8x1x32xf32>
    %50 = arith.mulf %12, %49 : vector<8x1x32xf32>
    %51 = arith.addf %24, %50 : vector<8x1x32xf32>
    %52 = arith.subf %51, %33 : vector<8x1x32xf32>
    %53 = arith.addf %24, %50 : vector<8x1x32xf32>
    %54 = arith.subf %53, %42 : vector<8x1x32xf32>
    %55 = arith.mulf %52, %52 : vector<8x1x32xf32>
    %cst_26 = arith.constant dense<0.000000e+00> : vector<8x1xf32>
    %56 = vector.multi_reduction <add>, %55, %cst_26 [2] : vector<8x1x32xf32> to vector<8x1xf32>
    %57 = vector.shape_cast %56 : vector<8x1xf32> to vector<8x1x1xf32>
    %58 = arith.mulf %54, %54 : vector<8x1x32xf32>
    %cst_27 = arith.constant dense<0.000000e+00> : vector<8x1xf32>
    %59 = vector.multi_reduction <add>, %58, %cst_27 [2] : vector<8x1x32xf32> to vector<8x1xf32>
    %60 = vector.shape_cast %59 : vector<8x1xf32> to vector<8x1x1xf32>
    %61 = arith.subf %60, %57 : vector<8x1x1xf32>
    %cst_28 = arith.constant 0.000000e+00 : f32
    %62 = vector.broadcast %cst_28 : f32 to vector<8x1x1xf32>
    %63 = arith.subf %62, %61 : vector<8x1x1xf32>
    %cst_29 = arith.constant 0.000000e+00 : f32
    %64 = vector.broadcast %cst_29 : f32 to vector<8x1x1xf32>
    %65 = arith.maximumf %63, %64 : vector<8x1x1xf32>
    %66 = vector.broadcast %cst_29 : f32 to vector<8x1x1xf32>
    %67 = arith.subf %63, %66 : vector<8x1x1xf32>
    %68 = arith.cmpf one, %67, %67 : vector<8x1x1xf32>
    %69 = vector.broadcast %cst_29 : f32 to vector<8x1x1xf32>
    %70 = arith.addf %63, %69 : vector<8x1x1xf32>
    %71 = math.absf %67 : vector<8x1x1xf32>
    %cst_30 = arith.constant 0.000000e+00 : f32
    %72 = vector.broadcast %cst_30 : f32 to vector<8x1x1xf32>
    %73 = arith.subf %72, %71 : vector<8x1x1xf32>
    %74 = math.exp %73 : vector<8x1x1xf32>
    %75 = math.log1p %74 : vector<8x1x1xf32>
    %76 = arith.addf %65, %75 : vector<8x1x1xf32>
    %77 = arith.select %68, %70, %76 : vector<8x1x1xi1>, vector<8x1x1xf32>
    %cst_31 = arith.constant 0.000000e+00 : f32
    %78 = vector.broadcast %cst_31 : f32 to vector<8x1x1xf32>
    %79 = arith.subf %78, %77 : vector<8x1x1xf32>
    %cst_32 = arith.constant 0.000000e+00 : f32
    %80 = vector.broadcast %cst_32 : f32 to vector<8x1x1xf32>
    %81 = arith.subf %80, %79 : vector<8x1x1xf32>
    %c0_33 = arith.constant 0 : index
    %c0_34 = arith.constant 0 : index
    %c0_35 = arith.constant 0 : index
    %82 = vector.load %arg7[%c0_33, %c0_34, %c0_35] : memref<1x1x1xf32, #tpu.memory_space<vmem>>, vector<1x1x1xf32>
    %83 = arith.mulf %81, %10 : vector<8x1x1xf32>
    %84 = vector.shape_cast %83 : vector<8x1x1xf32> to vector<1x8x1x1xf32>
    %cst_36 = arith.constant dense<0.000000e+00> : vector<1xf32>
    %85 = vector.multi_reduction <add>, %84, %cst_36 [1, 2, 3] : vector<1x8x1x1xf32> to vector<1xf32>
    %86 = vector.shape_cast %85 : vector<1xf32> to vector<1x1x1x1xf32>
    %87 = vector.extract %86[0, 0, 0, 0] : f32 from vector<1x1x1x1xf32>
    %88 = vector.broadcast %87 : f32 to vector<1x1x1xf32>
    %89 = arith.addf %82, %88 : vector<1x1x1xf32>
    %c0_37 = arith.constant 0 : index
    %c0_38 = arith.constant 0 : index
    %c0_39 = arith.constant 0 : index
    %90 = vector.load %arg7[%c0_37, %c0_38, %c0_39] : memref<1x1x1xf32, #tpu.memory_space<vmem>>, vector<1x1x1xf32>
    tpu.vector_store %arg7[%c0_37, %c0_38, %c0_39], %89 {strides = array<i32>} : memref<1x1x1xf32, #tpu.memory_space<vmem>>, vector<1x1x1xf32>,
    %91 = arith.mulf %24, %24 : vector<8x1x32xf32>
    %92 = vector.broadcast %10 : vector<8x1x1xf32> to vector<8x1x32xf32>
    %93 = arith.mulf %91, %92 : vector<8x1x32xf32>
    %94 = vector.shape_cast %93 : vector<8x1x32xf32> to vector<1x8x1x32xf32>
    %cst_40 = arith.constant dense<0.000000e+00> : vector<1xf32>
    %95 = vector.multi_reduction <add>, %94, %cst_40 [1, 2, 3] : vector<1x8x1x32xf32> to vector<1xf32>
    %96 = vector.shape_cast %95 : vector<1xf32> to vector<1x1x1x1xf32>
    %97 = vector.extract %96[0, 0, 0, 0] : f32 from vector<1x1x1x1xf32>
    %98 = vector.broadcast %97 : f32 to vector<1x1x1xf32>
    %99 = arith.mulf %50, %50 : vector<8x1x32xf32>
    %100 = vector.broadcast %10 : vector<8x1x1xf32> to vector<8x1x32xf32>
    %101 = arith.mulf %99, %100 : vector<8x1x32xf32>
    %102 = vector.shape_cast %101 : vector<8x1x32xf32> to vector<1x8x1x32xf32>
    %cst_41 = arith.constant dense<0.000000e+00> : vector<1xf32>
    %103 = vector.multi_reduction <add>, %102, %cst_41 [1, 2, 3] : vector<1x8x1x32xf32> to vector<1xf32>
    %104 = vector.shape_cast %103 : vector<1xf32> to vector<1x1x1x1xf32>
    %105 = vector.extract %104[0, 0, 0, 0] : f32 from vector<1x1x1x1xf32>
    %106 = vector.broadcast %105 : f32 to vector<1x1x1xf32>
    %107 = arith.addf %98, %106 : vector<1x1x1xf32>
    %108 = arith.mulf %33, %33 : vector<8x1x32xf32>
    %109 = vector.broadcast %10 : vector<8x1x1xf32> to vector<8x1x32xf32>
    %110 = arith.mulf %108, %109 : vector<8x1x32xf32>
    %111 = vector.shape_cast %110 : vector<8x1x32xf32> to vector<1x8x1x32xf32>
    %cst_42 = arith.constant dense<0.000000e+00> : vector<1xf32>
    %112 = vector.multi_reduction <add>, %111, %cst_42 [1, 2, 3] : vector<1x8x1x32xf32> to vector<1xf32>
    %113 = vector.shape_cast %112 : vector<1xf32> to vector<1x1x1x1xf32>
    %114 = vector.extract %113[0, 0, 0, 0] : f32 from vector<1x1x1x1xf32>
    %115 = vector.broadcast %114 : f32 to vector<1x1x1xf32>
    %116 = arith.addf %107, %115 : vector<1x1x1xf32>
    %117 = arith.mulf %42, %42 : vector<8x1x32xf32>
    %118 = vector.broadcast %10 : vector<8x1x1xf32> to vector<8x1x32xf32>
    %119 = arith.mulf %117, %118 : vector<8x1x32xf32>
    %120 = vector.shape_cast %119 : vector<8x1x32xf32> to vector<1x8x1x32xf32>
    %cst_43 = arith.constant dense<0.000000e+00> : vector<1xf32>
    %121 = vector.multi_reduction <add>, %120, %cst_43 [1, 2, 3] : vector<1x8x1x32xf32> to vector<1xf32>
    %122 = vector.shape_cast %121 : vector<1xf32> to vector<1x1x1x1xf32>
    %123 = vector.extract %122[0, 0, 0, 0] : f32 from vector<1x1x1x1xf32>
    %124 = vector.broadcast %123 : f32 to vector<1x1x1xf32>
    %125 = arith.addf %116, %124 : vector<1x1x1xf32>
    %cst_44 = arith.constant 5.000000e-01 : f32
    %126 = vector.broadcast %cst_44 : f32 to vector<1x1x1xf32>
    %127 = arith.mulf %126, %125 : vector<1x1x1xf32>
    %c0_45 = arith.constant 0 : index
    %c0_46 = arith.constant 0 : index
    %c0_47 = arith.constant 0 : index
    %128 = vector.load %arg8[%c0_45, %c0_46, %c0_47] : memref<1x1x1xf32, #tpu.memory_space<vmem>>, vector<1x1x1xf32>
    %129 = arith.addf %128, %127 : vector<1x1x1xf32>
    %c0_48 = arith.constant 0 : index
    %c0_49 = arith.constant 0 : index
    %c0_50 = arith.constant 0 : index
    %130 = vector.load %arg8[%c0_48, %c0_49, %c0_50] : memref<1x1x1xf32, #tpu.memory_space<vmem>>, vector<1x1x1xf32>
    tpu.vector_store %arg8[%c0_48, %c0_49, %c0_50], %129 {strides = array<i32>} : memref<1x1x1xf32, #tpu.memory_space<vmem>>, vector<1x1x1xf32>,
    %c0_i32_51 = arith.constant 0 : i32
    %131 = arith.cmpi eq, %arg0, %c0_i32_51 : i32
    %132 = arith.extui %131 : i1 to i32
    %c0_i32_52 = arith.constant 0 : i32
    %133 = arith.cmpi ne, %132, %c0_i32_52 : i32
    scf.if %133 {
      %c0_53 = arith.constant 0 : index
      %c0_54 = arith.constant 0 : index
      %c0_55 = arith.constant 0 : index
      %134 = vector.load %arg7[%c0_53, %c0_54, %c0_55] : memref<1x1x1xf32, #tpu.memory_space<vmem>>, vector<1x1x1xf32>
      %cst_56 = arith.constant 1.250000e-01 : f32
      %135 = vector.broadcast %cst_56 : f32 to vector<1x1x1xf32>
      %136 = arith.mulf %134, %135 : vector<1x1x1xf32>
      %c0_57 = arith.constant 0 : index
      %c0_58 = arith.constant 0 : index
      %c0_59 = arith.constant 0 : index
      %137 = vector.load %arg8[%c0_57, %c0_58, %c0_59] : memref<1x1x1xf32, #tpu.memory_space<vmem>>, vector<1x1x1xf32>
      %cst_60 = arith.constant 1.250000e-01 : f32
      %138 = vector.broadcast %cst_60 : f32 to vector<1x1x1xf32>
      %139 = arith.mulf %137, %138 : vector<1x1x1xf32>
      %cst_61 = arith.constant 9.99999974E-5 : f32
      %140 = vector.broadcast %cst_61 : f32 to vector<1x1x1xf32>
      %141 = arith.mulf %140, %139 : vector<1x1x1xf32>
      %142 = arith.addf %136, %141 : vector<1x1x1xf32>
      %c0_62 = arith.constant 0 : index
      %c0_63 = arith.constant 0 : index
      %c0_64 = arith.constant 0 : index
      %143 = vector.load %arg6[%c0_62, %c0_63, %c0_64] : memref<1x1x1xf32, #tpu.memory_space<vmem>>, vector<1x1x1xf32>
      tpu.vector_store %arg6[%c0_62, %c0_63, %c0_64], %142 {strides = array<i32>} : memref<1x1x1xf32, #tpu.memory_space<vmem>>, vector<1x1x1xf32>,
    } else {
    }
    return
  }
  func.func @transform_0(%arg0: i32) -> (i32, i32, i32) {
    %c0_i32 = arith.constant 0 : i32
    %c0_i32_0 = arith.constant 0 : i32
    %c0_i32_1 = arith.constant 0 : i32
    return %arg0, %c0_i32, %c0_i32_0 : i32, i32, i32
  }
  func.func @transform_1(%arg0: i32) -> (i32, i32, i32) {
    %c0_i32 = arith.constant 0 : i32
    %c0_i32_0 = arith.constant 0 : i32
    %c0_i32_1 = arith.constant 0 : i32
    return %arg0, %c0_i32, %c0_i32_0 : i32, i32, i32
  }
  func.func @transform_2(%arg0: i32) -> (i32, i32, i32) {
    %c0_i32 = arith.constant 0 : i32
    %c0_i32_0 = arith.constant 0 : i32
    %c0_i32_1 = arith.constant 0 : i32
    return %arg0, %c0_i32, %c0_i32_0 : i32, i32, i32
  }
  func.func @transform_3(%arg0: i32) -> (i32, i32, i32) {
    %c0_i32 = arith.constant 0 : i32
    %c0_i32_0 = arith.constant 0 : i32
    %c0_i32_1 = arith.constant 0 : i32
    return %arg0, %c0_i32, %c0_i32_0 : i32, i32, i32
  }
  func.func @transform_4(%arg0: i32) -> (i32, i32, i32) {
    %c0_i32 = arith.constant 0 : i32
    %c0_i32_0 = arith.constant 0 : i32
    %c0_i32_1 = arith.constant 0 : i32
    return %arg0, %c0_i32, %c0_i32_0 : i32, i32, i32
  }
  func.func @transform_5(%arg0: i32) -> (i32, i32, i32) {
    %c0_i32 = arith.constant 0 : i32
    %c0_i32_0 = arith.constant 0 : i32
    %c0_i32_1 = arith.constant 0 : i32
    %c0_i32_2 = arith.constant 0 : i32
    return %c0_i32, %c0_i32_0, %c0_i32_1 : i32, i32, i32
  }
}

</mosaic_0001>

<llo_original>
// kernel: tpu_custom_call.1
$region0: #{tpu_custom_call.1}
  #allocation0 [shape = 'u32[]', space=smem, size = 0x4, offset = 0x4, fixed_abs, tag = 'smem constant byte address 0x4 - core index']
  #allocation1 [shape = 'u32[72,128]{1,0:T(1,128)}', space=vmem, size = 0x9000, scoped, tag = 'internal scratch']
  #allocation2 [shape = 'f32[1,1,1]{2,1,0:T(1,128)}', space=vmem, size = 0x200, scoped, tag = 'scratch operand']
  #allocation3 [shape = 'f32[1,1,1]{2,1,0:T(1,128)}', space=vmem, size = 0x200, scoped, tag = 'scratch operand']
  %s0 = inlined_call_operand.hbm [shape: f32[8,1,32], index: 0, kind: input, shape index: {}]
  %s1 = inlined_call_operand.hbm [shape: f32[8,32,32], index: 1, kind: input, shape index: {}]
  %s2 = inlined_call_operand.hbm [shape: f32[8,1,32], index: 2, kind: input, shape index: {}]
  %s3 = inlined_call_operand.hbm [shape: f32[8,1,32], index: 3, kind: input, shape index: {}]
  %s4 = inlined_call_operand.hbm [shape: f32[8,1,32], index: 4, kind: input, shape index: {}]
  %s5 = inlined_call_operand.hbm [shape: f32[1,1,1], index: 5, kind: output, shape index: {}]
  %s6 = sld [smem:[#allocation0]]
  $region58: #{tpu_custom_call.1} parent=0
    _
  %s8 = ssub.s32 1, %s6
  %s9 = scalar_select 0, %s8, %s6
  $region1: #{tpu_custom_call.1} parent=0
    #allocation4 [shape = 'u8[4096]{0}', space=vmem, size = 0x1000, scoped, tag = 'input window, operand 0, single buffered']
    #allocation5 [shape = 's32[1]{0}', space=sflag, size = 0x4, scoped, tag = 'scoped memory for tpu_custom_call.1']
    #allocation6 [shape = 's32[1]{0}', space=sflag, size = 0x4, scoped, tag = 'scoped memory for tpu_custom_call.1']
    #allocation7 [shape = 'u8[131072]{0}', space=vmem, size = 0x20000, scoped, tag = 'input window, operand 1, single buffered']
    #allocation8 [shape = 's32[1]{0}', space=sflag, size = 0x4, scoped, tag = 'scoped memory for tpu_custom_call.1']
    #allocation9 [shape = 'u8[4096]{0}', space=vmem, size = 0x1000, scoped, tag = 'input window, operand 2, single buffered']
    #allocation10 [shape = 'u8[4096]{0}', space=vmem, size = 0x1000, scoped, tag = 'input window, operand 3, single buffered']
    #allocation11 [shape = 's32[1]{0}', space=sflag, size = 0x4, scoped, tag = 'scoped memory for tpu_custom_call.1']
    #allocation12 [shape = 'u8[4096]{0}', space=vmem, size = 0x1000, scoped, tag = 'input window, operand 4, single buffered']
    #allocation13 [shape = 'u8[512]{0}', space=vmem, size = 0x400, scoped, tag = 'output window, operand 0, single buffered']
    %10 = vsyncpa [#allocation5], 0
    %11 = vsyncpa [#allocation8], 0
    %12 = vsyncpa [#allocation11], 0
    %13 = vsyncpa [#allocation6], 0
    // Predicated region
    $region2: #{tpu_custom_call.1} parent=1 // pred_check
      _
    $region3: #{tpu_custom_call.1} parent=1 // pred_check_branch
      %15 = sbr.rel (0) target = $region5
    $region4: #{tpu_custom_call.1} parent=1 // pred_region
      %17 = vsyncadd [#allocation5], 0
      %s18 = sshll.u32 %s0, 4
      %s19 = int_to_ptr.hbm [resolvable:$true] %s18
      %s20 = sshll.u32 [#allocation4], 4
      %s21 = int_to_ptr.vmem [resolvable:$true] %s20
      %26 = dma.hbm_to_vmem [thread:$0]  %s19, 128, %s21, [#allocation5], 16, 16, 1
    $region5: #{tpu_custom_call.1} parent=1 // pred_fallthru
      _
    // Predicated region
    $region6: #{tpu_custom_call.1} parent=1 // pred_check
      _
    $region7: #{tpu_custom_call.1} parent=1 // pred_check_branch
      %28 = sbr.rel (0) target = $region9
    $region8: #{tpu_custom_call.1} parent=1 // pred_region
      %30 = vsyncadd [#allocation8], 0
      %s31 = sshll.u32 %s1, 4
      %s32 = int_to_ptr.hbm [resolvable:$true] %s31
      %s33 = sshll.u32 [#allocation7], 4
      %s34 = int_to_ptr.vmem [resolvable:$true] %s33
      %39 = dma.hbm_to_vmem [thread:$0]  %s32, 4096, %s34, [#allocation8], 128, 128, 8
    $region9: #{tpu_custom_call.1} parent=1 // pred_fallthru
      _
    // Predicated region
    $region10: #{tpu_custom_call.1} parent=1 // pred_check
      _
    $region11: #{tpu_custom_call.1} parent=1 // pred_check_branch
      %41 = sbr.rel (0) target = $region13
    $region12: #{tpu_custom_call.1} parent=1 // pred_region
      %43 = vsyncadd [#allocation8], 0
      %s44 = sshll.u32 %s2, 4
      %s45 = int_to_ptr.hbm [resolvable:$true] %s44
      %s46 = sshll.u32 [#allocation9], 4
      %s47 = int_to_ptr.vmem [resolvable:$true] %s46
      %52 = dma.hbm_to_vmem [thread:$0]  %s45, 128, %s47, [#allocation8], 16, 16, 1
    $region13: #{tpu_custom_call.1} parent=1 // pred_fallthru
      _
    // Predicated region
    $region14: #{tpu_custom_call.1} parent=1 // pred_check
      _
    $region15: #{tpu_custom_call.1} parent=1 // pred_check_branch
      %54 = sbr.rel (0) target = $region17
    $region16: #{tpu_custom_call.1} parent=1 // pred_region
      %56 = vsyncadd [#allocation11], 0
      %s57 = sshll.u32 %s3, 4
      %s58 = int_to_ptr.hbm [resolvable:$true] %s57
      %s59 = sshll.u32 [#allocation10], 4
      %s60 = int_to_ptr.vmem [resolvable:$true] %s59
      %65 = dma.hbm_to_vmem [thread:$0]  %s58, 128, %s60, [#allocation11], 16, 16, 1
    $region17: #{tpu_custom_call.1} parent=1 // pred_fallthru
      _
    // Predicated region
    $region18: #{tpu_custom_call.1} parent=1 // pred_check
      _
    $region19: #{tpu_custom_call.1} parent=1 // pred_check_branch
      %67 = sbr.rel (0) target = $region21
    $region20: #{tpu_custom_call.1} parent=1 // pred_region
      %69 = vsyncadd [#allocation11], 0
      %s70 = sshll.u32 %s4, 4
      %s71 = int_to_ptr.hbm [resolvable:$true] %s70
      %s72 = sshll.u32 [#allocation12], 4
      %s73 = int_to_ptr.vmem [resolvable:$true] %s72
      %78 = dma.hbm_to_vmem [thread:$0]  %s71, 128, %s73, [#allocation11], 16, 16, 1
    $region21: #{tpu_custom_call.1} parent=1 // pred_fallthru
      _
    // Predicated region
    $region22: #{tpu_custom_call.1} parent=1 // pred_check
      _
    $region23: #{tpu_custom_call.1} parent=1 // pred_check_branch
      %80 = sbr.rel (0) target = $region25
    $region24: #{tpu_custom_call.1} parent=1 // pred_region
      %82 = dma.done [#allocation5], 128
    $region25: #{tpu_custom_call.1} parent=1 // pred_fallthru
      _
    // Predicated region
    $region26: #{tpu_custom_call.1} parent=1 // pred_check
      _
    $region27: #{tpu_custom_call.1} parent=1 // pred_check_branch
      %84 = sbr.rel (0) target = $region29
    $region28: #{tpu_custom_call.1} parent=1 // pred_region
      %86 = dma.done [#allocation8], 4096
    $region29: #{tpu_custom_call.1} parent=1 // pred_fallthru
      _
    // Predicated region
    $region30: #{tpu_custom_call.1} parent=1 // pred_check
      _
    $region31: #{tpu_custom_call.1} parent=1 // pred_check_branch
      %88 = sbr.rel (0) target = $region33
    $region32: #{tpu_custom_call.1} parent=1 // pred_region
      %90 = dma.done [#allocation8], 128
    $region33: #{tpu_custom_call.1} parent=1 // pred_fallthru
      _
    // Predicated region
    $region34: #{tpu_custom_call.1} parent=1 // pred_check
      _
    $region35: #{tpu_custom_call.1} parent=1 // pred_check_branch
      %92 = sbr.rel (0) target = $region37
    $region36: #{tpu_custom_call.1} parent=1 // pred_region
      %94 = dma.done [#allocation11], 128
    $region37: #{tpu_custom_call.1} parent=1 // pred_fallthru
      _
    // Predicated region
    $region38: #{tpu_custom_call.1} parent=1 // pred_check
      _
    $region39: #{tpu_custom_call.1} parent=1 // pred_check_branch
      %96 = sbr.rel (0) target = $region41
    $region40: #{tpu_custom_call.1} parent=1 // pred_region
      %98 = dma.done [#allocation11], 128
    $region41: #{tpu_custom_call.1} parent=1 // pred_fallthru
      _
    %p99 = scmp.eq.s32.totalorder 0, 0
    // Predicated region
    $region42: #{tpu_custom_call.1} parent=1 // pred_check
      %p100 = pneg %p99
    $region43: #{tpu_custom_call.1} parent=1 // pred_check_branch
      %102 = sbr.rel (%p100) target = $region45
    $region44: #{tpu_custom_call.1} parent=1 // pred_region
      %vm103 = vcmask 0
      %104 = vst.msk [vmem:[#allocation2] sm:$0x1] %vm103, 0.0
      %105 = vst.msk [vmem:[#allocation3] sm:$0x1] %vm103, 0.0
    $region45: #{tpu_custom_call.1} parent=1 // pred_fallthru
      _
    %s106 = smul.u32 0, 8
    %v107 = vstv %s106
    %v108 = vadd.s32 %v107, 1
    %v109 = vadd.s32 %v107, 2
    %v110 = vadd.s32 %v107, 3
    %v111 = vadd.s32 %v107, 4
    %v112 = vadd.s32 %v107, 5
    %v113 = vadd.s32 %v107, 6
    %v114 = vadd.s32 %v107, 7
    %vm115 = vcmp.lt.s32.totalorder %v107, 8
    %vm116 = vcmp.lt.s32.totalorder %v108, 8
    %vm117 = vcmp.lt.s32.totalorder %v109, 8
    %vm118 = vcmp.lt.s32.totalorder %v110, 8
    %vm119 = vcmp.lt.s32.totalorder %v111, 8
    %vm120 = vcmp.lt.s32.totalorder %v112, 8
    %vm121 = vcmp.lt.s32.totalorder %v113, 8
    %vm122 = vcmp.lt.s32.totalorder %v114, 8
    %v123 = vsel %vm115, 1, 0
    %v124 = vsel %vm116, 1, 0
    %v125 = vsel %vm117, 1, 0
    %v126 = vsel %vm118, 1, 0
    %v127 = vsel %vm119, 1, 0
    %v128 = vsel %vm120, 1, 0
    %v129 = vsel %vm121, 1, 0
    %v130 = vsel %vm122, 1, 0
    %v131 = vcvt.s32.f32 %v123
    %v132 = vcvt.s32.f32 %v124
    %v133 = vcvt.s32.f32 %v125
    %v134 = vcvt.s32.f32 %v126
    %v135 = vcvt.s32.f32 %v127
    %v136 = vcvt.s32.f32 %v128
    %v137 = vcvt.s32.f32 %v129
    %v138 = vcvt.s32.f32 %v130
    %v139 = vld [vmem:[#allocation7] sm:$0xff]
    %v140 = vld [vmem:[#allocation7 + $0x8] sm:$0xff]
    %v141 = vld [vmem:[#allocation7 + $0x10] sm:$0xff]
    %v142 = vld [vmem:[#allocation7 + $0x18] sm:$0xff]
    %v143 = vld [vmem:[#allocation7 + $0x20] sm:$0xff]
    %v144 = vld [vmem:[#allocation7 + $0x28] sm:$0xff]
    %v145 = vld [vmem:[#allocation7 + $0x30] sm:$0xff]
    %v146 = vld [vmem:[#allocation7 + $0x38] sm:$0xff]
    %v147 = vld [vmem:[#allocation7 + $0x40] sm:$0xff]
    %v148 = vld [vmem:[#allocation7 + $0x48] sm:$0xff]
    %v149 = vld [vmem:[#allocation7 + $0x50] sm:$0xff]
    %v150 = vld [vmem:[#allocation7 + $0x58] sm:$0xff]
    %v151 = vld [vmem:[#allocation7 + $0x60] sm:$0xff]
    %v152 = vld [vmem:[#allocation7 + $0x68] sm:$0xff]
    %v153 = vld [vmem:[#allocation7 + $0x70] sm:$0xff]
    %v154 = vld [vmem:[#allocation7 + $0x78] sm:$0xff]
    %v155 = vld [vmem:[#allocation7 + $0x80] sm:$0xff]
    %v156 = vld [vmem:[#allocation7 + $0x88] sm:$0xff]
    %v157 = vld [vmem:[#allocation7 + $0x90] sm:$0xff]
    %v158 = vld [vmem:[#allocation7 + $0x98] sm:$0xff]
    %v159 = vld [vmem:[#allocation7 + $0xa0] sm:$0xff]
    %v160 = vld [vmem:[#allocation7 + $0xa8] sm:$0xff]
    %v161 = vld [vmem:[#allocation7 + $0xb0] sm:$0xff]
    %v162 = vld [vmem:[#allocation7 + $0xb8] sm:$0xff]
    %v163 = vld [vmem:[#allocation7 + $0xc0] sm:$0xff]
    %v164 = vld [vmem:[#allocation7 + $0xc8] sm:$0xff]
    %v165 = vld [vmem:[#allocation7 + $0xd0] sm:$0xff]
    %v166 = vld [vmem:[#allocation7 + $0xd8] sm:$0xff]
    %v167 = vld [vmem:[#allocation7 + $0xe0] sm:$0xff]
    %v168 = vld [vmem:[#allocation7 + $0xe8] sm:$0xff]
    %v169 = vld [vmem:[#allocation7 + $0xf0] sm:$0xff]
    %v170 = vld [vmem:[#allocation7 + $0xf8] sm:$0xff]
    %v171 = vld [vmem:[#allocation4] sm:$0x1]
    %v172 = vld [vmem:[#allocation4 + $0x1] sm:$0x1]
    %v173 = vld [vmem:[#allocation4 + $0x2] sm:$0x1]
    %v174 = vld [vmem:[#allocation4 + $0x3] sm:$0x1]
    %v175 = vld [vmem:[#allocation4 + $0x4] sm:$0x1]
    %v176 = vld [vmem:[#allocation4 + $0x5] sm:$0x1]
    %v177 = vld [vmem:[#allocation4 + $0x6] sm:$0x1]
    %v178 = vld [vmem:[#allocation4 + $0x7] sm:$0x1]
    %v179 = vld [vmem:[#allocation9] sm:$0x1]
    %v180 = vld [vmem:[#allocation9 + $0x1] sm:$0x1]
    %v181 = vld [vmem:[#allocation9 + $0x2] sm:$0x1]
    %v182 = vld [vmem:[#allocation9 + $0x3] sm:$0x1]
    %v183 = vld [vmem:[#allocation9 + $0x4] sm:$0x1]
    %v184 = vld [vmem:[#allocation9 + $0x5] sm:$0x1]
    %v185 = vld [vmem:[#allocation9 + $0x6] sm:$0x1]
    %v186 = vld [vmem:[#allocation9 + $0x7] sm:$0x1]
    %v187 = vld [vmem:[#allocation10] sm:$0x1]
    %v188 = vld [vmem:[#allocation10 + $0x1] sm:$0x1]
    %v189 = vld [vmem:[#allocation10 + $0x2] sm:$0x1]
    %v190 = vld [vmem:[#allocation10 + $0x3] sm:$0x1]
    %v191 = vld [vmem:[#allocation10 + $0x4] sm:$0x1]
    %v192 = vld [vmem:[#allocation10 + $0x5] sm:$0x1]
    %v193 = vld [vmem:[#allocation10 + $0x6] sm:$0x1]
    %v194 = vld [vmem:[#allocation10 + $0x7] sm:$0x1]
    %v195 = vld [vmem:[#allocation12] sm:$0x1]
    %v196 = vld [vmem:[#allocation12 + $0x1] sm:$0x1]
    %v197 = vld [vmem:[#allocation12 + $0x2] sm:$0x1]
    %v198 = vld [vmem:[#allocation12 + $0x3] sm:$0x1]
    %v199 = vld [vmem:[#allocation12 + $0x4] sm:$0x1]
    %v200 = vld [vmem:[#allocation12 + $0x5] sm:$0x1]
    %v201 = vld [vmem:[#allocation12 + $0x6] sm:$0x1]
    %v202 = vld [vmem:[#allocation12 + $0x7] sm:$0x1]
    %vm203 = vcmask 261120
    %v205 = vsel %vm203, %v179, 0
    %207 = vmatpush.msra.mxu0 0.0
    %208 = vmatpush.msra.mxu0 0.0
    %209 = vmatpush.msra.mxu0 0.0
    %210 = vmatpush.msra.mxu0 0.0
    %211 = vmatpush.msra.mxu0 0.0
    %212 = vmatpush.msra.mxu0 0.0
    %213 = vmatpush.msra.mxu0 0.0
    %214 = vmatpush.msra.mxu0 0.0
    %215 = vmatpush.msra.mxu0 0.0
    %216 = vmatpush.msra.mxu0 0.0
    %217 = vmatpush.msra.mxu0 0.0
    %218 = vmatpush.msra.mxu0 0.0
    %219 = vmatpush.msra.mxu0 %v142
    %220 = vmatpush.msra.mxu0 %v141
    %221 = vmatpush.msra.mxu0 %v140
    %222 = vmatpush.msra.mxu0 %v139
    %223 = vmatmul.f32.gmra.mxu0 %v205
    %v224 = vpop.f32.mrf.mxu0
    %v225 = vadd.f32 0.0, %v224
    %226 = vdwg.mxu0
    %v228 = vsel %vm203, %v180, 0
    %230 = vmatpush.msra.mxu0 0.0
    %231 = vmatpush.msra.mxu0 0.0
    %232 = vmatpush.msra.mxu0 0.0
    %233 = vmatpush.msra.mxu0 0.0
    %234 = vmatpush.msra.mxu0 0.0
    %235 = vmatpush.msra.mxu0 0.0
    %236 = vmatpush.msra.mxu0 0.0
    %237 = vmatpush.msra.mxu0 0.0
    %238 = vmatpush.msra.mxu0 0.0
    %239 = vmatpush.msra.mxu0 0.0
    %240 = vmatpush.msra.mxu0 0.0
    %241 = vmatpush.msra.mxu0 0.0
    %242 = vmatpush.msra.mxu0 %v146
    %243 = vmatpush.msra.mxu0 %v145
    %244 = vmatpush.msra.mxu0 %v144
    %245 = vmatpush.msra.mxu0 %v143
    %246 = vmatmul.f32.gmra.mxu0 %v228
    %v247 = vpop.f32.mrf.mxu0
    %v248 = vadd.f32 0.0, %v247
    %249 = vdwg.mxu0
    %v251 = vsel %vm203, %v181, 0
    %253 = vmatpush.msra.mxu0 0.0
    %254 = vmatpush.msra.mxu0 0.0
    %255 = vmatpush.msra.mxu0 0.0
    %256 = vmatpush.msra.mxu0 0.0
    %257 = vmatpush.msra.mxu0 0.0
    %258 = vmatpush.msra.mxu0 0.0
    %259 = vmatpush.msra.mxu0 0.0
    %260 = vmatpush.msra.mxu0 0.0
    %261 = vmatpush.msra.mxu0 0.0
    %262 = vmatpush.msra.mxu0 0.0
    %263 = vmatpush.msra.mxu0 0.0
    %264 = vmatpush.msra.mxu0 0.0
    %265 = vmatpush.msra.mxu0 %v150
    %266 = vmatpush.msra.mxu0 %v149
    %267 = vmatpush.msra.mxu0 %v148
    %268 = vmatpush.msra.mxu0 %v147
    %269 = vmatmul.f32.gmra.mxu0 %v251
    %v270 = vpop.f32.mrf.mxu0
    %v271 = vadd.f32 0.0, %v270
    %272 = vdwg.mxu0
    %v274 = vsel %vm203, %v182, 0
    %276 = vmatpush.msra.mxu0 0.0
    %277 = vmatpush.msra.mxu0 0.0
    %278 = vmatpush.msra.mxu0 0.0
    %279 = vmatpush.msra.mxu0 0.0
    %280 = vmatpush.msra.mxu0 0.0
    %281 = vmatpush.msra.mxu0 0.0
    %282 = vmatpush.msra.mxu0 0.0
    %283 = vmatpush.msra.mxu0 0.0
    %284 = vmatpush.msra.mxu0 0.0
    %285 = vmatpush.msra.mxu0 0.0
    %286 = vmatpush.msra.mxu0 0.0
    %287 = vmatpush.msra.mxu0 0.0
    %288 = vmatpush.msra.mxu0 %v154
    %289 = vmatpush.msra.mxu0 %v153
    %290 = vmatpush.msra.mxu0 %v152
    %291 = vmatpush.msra.mxu0 %v151
    %292 = vmatmul.f32.gmra.mxu0 %v274
    %v293 = vpop.f32.mrf.mxu0
    %v294 = vadd.f32 0.0, %v293
    %295 = vdwg.mxu0
    %v297 = vsel %vm203, %v183, 0
    %299 = vmatpush.msra.mxu0 0.0
    %300 = vmatpush.msra.mxu0 0.0
    %301 = vmatpush.msra.mxu0 0.0
    %302 = vmatpush.msra.mxu0 0.0
    %303 = vmatpush.msra.mxu0 0.0
    %304 = vmatpush.msra.mxu0 0.0
    %305 = vmatpush.msra.mxu0 0.0
    %306 = vmatpush.msra.mxu0 0.0
    %307 = vmatpush.msra.mxu0 0.0
    %308 = vmatpush.msra.mxu0 0.0
    %309 = vmatpush.msra.mxu0 0.0
    %310 = vmatpush.msra.mxu0 0.0
    %311 = vmatpush.msra.mxu0 %v158
    %312 = vmatpush.msra.mxu0 %v157
    %313 = vmatpush.msra.mxu0 %v156
    %314 = vmatpush.msra.mxu0 %v155
    %315 = vmatmul.f32.gmra.mxu0 %v297
    %v316 = vpop.f32.mrf.mxu0
    %v317 = vadd.f32 0.0, %v316
    %318 = vdwg.mxu0
    %v320 = vsel %vm203, %v184, 0
    %322 = vmatpush.msra.mxu0 0.0
    %323 = vmatpush.msra.mxu0 0.0
    %324 = vmatpush.msra.mxu0 0.0
    %325 = vmatpush.msra.mxu0 0.0
    %326 = vmatpush.msra.mxu0 0.0
    %327 = vmatpush.msra.mxu0 0.0
    %328 = vmatpush.msra.mxu0 0.0
    %329 = vmatpush.msra.mxu0 0.0
    %330 = vmatpush.msra.mxu0 0.0
    %331 = vmatpush.msra.mxu0 0.0
    %332 = vmatpush.msra.mxu0 0.0
    %333 = vmatpush.msra.mxu0 0.0
    %334 = vmatpush.msra.mxu0 %v162
    %335 = vmatpush.msra.mxu0 %v161
    %336 = vmatpush.msra.mxu0 %v160
    %337 = vmatpush.msra.mxu0 %v159
    %338 = vmatmul.f32.gmra.mxu0 %v320
    %v339 = vpop.f32.mrf.mxu0
    %v340 = vadd.f32 0.0, %v339
    %341 = vdwg.mxu0
    %v343 = vsel %vm203, %v185, 0
    %345 = vmatpush.msra.mxu0 0.0
    %346 = vmatpush.msra.mxu0 0.0
    %347 = vmatpush.msra.mxu0 0.0
    %348 = vmatpush.msra.mxu0 0.0
    %349 = vmatpush.msra.mxu0 0.0
    %350 = vmatpush.msra.mxu0 0.0
    %351 = vmatpush.msra.mxu0 0.0
    %352 = vmatpush.msra.mxu0 0.0
    %353 = vmatpush.msra.mxu0 0.0
    %354 = vmatpush.msra.mxu0 0.0
    %355 = vmatpush.msra.mxu0 0.0
    %356 = vmatpush.msra.mxu0 0.0
    %357 = vmatpush.msra.mxu0 %v166
    %358 = vmatpush.msra.mxu0 %v165
    %359 = vmatpush.msra.mxu0 %v164
    %360 = vmatpush.msra.mxu0 %v163
    %361 = vmatmul.f32.gmra.mxu0 %v343
    %v362 = vpop.f32.mrf.mxu0
    %v363 = vadd.f32 0.0, %v362
    %364 = vdwg.mxu0
    %v366 = vsel %vm203, %v186, 0
    %368 = vmatpush.msra.mxu0 0.0
    %369 = vmatpush.msra.mxu0 0.0
    %370 = vmatpush.msra.mxu0 0.0
    %371 = vmatpush.msra.mxu0 0.0
    %372 = vmatpush.msra.mxu0 0.0
    %373 = vmatpush.msra.mxu0 0.0
    %374 = vmatpush.msra.mxu0 0.0
    %375 = vmatpush.msra.mxu0 0.0
    %376 = vmatpush.msra.mxu0 0.0
    %377 = vmatpush.msra.mxu0 0.0
    %378 = vmatpush.msra.mxu0 0.0
    %379 = vmatpush.msra.mxu0 0.0
    %380 = vmatpush.msra.mxu0 %v170
    %381 = vmatpush.msra.mxu0 %v169
    %382 = vmatpush.msra.mxu0 %v168
    %383 = vmatpush.msra.mxu0 %v167
    %384 = vmatmul.f32.gmra.mxu0 %v366
    %v385 = vpop.f32.mrf.mxu0
    %v386 = vadd.f32 0.0, %v385
    %387 = vdwg.mxu0
    %v388 = vmul.f32 %v225, %v225
    %v389 = vmul.f32 %v248, %v248
    %v390 = vmul.f32 %v271, %v271
    %v391 = vmul.f32 %v294, %v294
    %v392 = vmul.f32 %v317, %v317
    %v393 = vmul.f32 %v340, %v340
    %v394 = vmul.f32 %v363, %v363
    %v395 = vmul.f32 %v386, %v386
    %vm396 = vcmask 253952
    %v397 = vsel %vm396, %v388, 0.0
    %398 = vadd.xlane.f32.xlu0 %v397
    %v399 = vpop.xlane.xlu0 %398
    %v400 = vsel %vm396, %v389, 0.0
    %401 = vadd.xlane.f32.xlu0 %v400
    %v402 = vpop.xlane.xlu0 %401
    %v403 = vsel %vm396, %v390, 0.0
    %404 = vadd.xlane.f32.xlu0 %v403
    %v405 = vpop.xlane.xlu0 %404
    %v406 = vsel %vm396, %v391, 0.0
    %407 = vadd.xlane.f32.xlu0 %v406
    %v408 = vpop.xlane.xlu0 %407
    %v409 = vsel %vm396, %v392, 0.0
    %410 = vadd.xlane.f32.xlu0 %v409
    %v411 = vpop.xlane.xlu0 %410
    %v412 = vsel %vm396, %v393, 0.0
    %413 = vadd.xlane.f32.xlu0 %v412
    %v414 = vpop.xlane.xlu0 %413
    %v415 = vsel %vm396, %v394, 0.0
    %416 = vadd.xlane.f32.xlu0 %v415
    %v417 = vpop.xlane.xlu0 %416
    %v418 = vsel %vm396, %v395, 0.0
    %419 = vadd.xlane.f32.xlu0 %v418
    %v420 = vpop.xlane.xlu0 %419
    %v421 = vadd.f32 %v399, 1e-12
    %v422 = vadd.f32 %v402, 1e-12
    %v423 = vadd.f32 %v405, 1e-12
    %v424 = vadd.f32 %v408, 1e-12
    %v425 = vadd.f32 %v411, 1e-12
    %v426 = vadd.f32 %v414, 1e-12
    %v427 = vadd.f32 %v417, 1e-12
    %v428 = vadd.f32 %v420, 1e-12
    %v429 = vrsqrt.pop %v421
    %v430 = vmul.f32 %v429, %v421
    %v431 = vmul.f32 %v430, %v429
    %v432 = vmul.f32 0.5, %v431
    %v433 = vsub.f32 1.5, %v432
    %v434 = vmul.f32 %v429, %v433
    %vm435 = vweird.f32 %v421
    %vm436 = vweird.f32 %v429
    %vm437 = vmor %vm435, %vm436
    %v438 = vsel %vm437, %v429, %v434
    %v439 = vrsqrt.pop %v422
    %v440 = vmul.f32 %v439, %v422
    %v441 = vmul.f32 %v440, %v439
    %v442 = vmul.f32 0.5, %v441
    %v443 = vsub.f32 1.5, %v442
    %v444 = vmul.f32 %v439, %v443
    %vm445 = vweird.f32 %v422
    %vm446 = vweird.f32 %v439
    %vm447 = vmor %vm445, %vm446
    %v448 = vsel %vm447, %v439, %v444
    %v449 = vrsqrt.pop %v423
    %v450 = vmul.f32 %v449, %v423
    %v451 = vmul.f32 %v450, %v449
    %v452 = vmul.f32 0.5, %v451
    %v453 = vsub.f32 1.5, %v452
    %v454 = vmul.f32 %v449, %v453
    %vm455 = vweird.f32 %v423
    %vm456 = vweird.f32 %v449
    %vm457 = vmor %vm455, %vm456
    %v458 = vsel %vm457, %v449, %v454
    %v459 = vrsqrt.pop %v424
    %v460 = vmul.f32 %v459, %v424
    %v461 = vmul.f32 %v460, %v459
    %v462 = vmul.f32 0.5, %v461
    %v463 = vsub.f32 1.5, %v462
    %v464 = vmul.f32 %v459, %v463
    %vm465 = vweird.f32 %v424
    %vm466 = vweird.f32 %v459
    %vm467 = vmor %vm465, %vm466
    %v468 = vsel %vm467, %v459, %v464
    %v469 = vrsqrt.pop %v425
    %v470 = vmul.f32 %v469, %v425
    %v471 = vmul.f32 %v470, %v469
    %v472 = vmul.f32 0.5, %v471
    %v473 = vsub.f32 1.5, %v472
    %v474 = vmul.f32 %v469, %v473
    %vm475 = vweird.f32 %v425
    %vm476 = vweird.f32 %v469
    %vm477 = vmor %vm475, %vm476
    %v478 = vsel %vm477, %v469, %v474
    %v479 = vrsqrt.pop %v426
    %v480 = vmul.f32 %v479, %v426
    %v481 = vmul.f32 %v480, %v479
    %v482 = vmul.f32 0.5, %v481
    %v483 = vsub.f32 1.5, %v482
    %v484 = vmul.f32 %v479, %v483
    %vm485 = vweird.f32 %v426
    %vm486 = vweird.f32 %v479
    %vm487 = vmor %vm485, %vm486
    %v488 = vsel %vm487, %v479, %v484
    %v489 = vrsqrt.pop %v427
    %v490 = vmul.f32 %v489, %v427
    %v491 = vmul.f32 %v490, %v489
    %v492 = vmul.f32 0.5, %v491
    %v493 = vsub.f32 1.5, %v492
    %v494 = vmul.f32 %v489, %v493
    %vm495 = vweird.f32 %v427
    %vm496 = vweird.f32 %v489
    %vm497 = vmor %vm495, %vm496
    %v498 = vsel %vm497, %v489, %v494
    %v499 = vrsqrt.pop %v428
    %v500 = vmul.f32 %v499, %v428
    %v501 = vmul.f32 %v500, %v499
    %v502 = vmul.f32 0.5, %v501
    %v503 = vsub.f32 1.5, %v502
    %v504 = vmul.f32 %v499, %v503
    %vm505 = vweird.f32 %v428
    %vm506 = vweird.f32 %v499
    %vm507 = vmor %vm505, %vm506
    %v508 = vsel %vm507, %v499, %v504
    %v509 = vmul.f32 %v225, %v438
    %v510 = vmul.f32 %v248, %v448
    %v511 = vmul.f32 %v271, %v458
    %v512 = vmul.f32 %v294, %v468
    %v513 = vmul.f32 %v317, %v478
    %v514 = vmul.f32 %v340, %v488
    %v515 = vmul.f32 %v363, %v498
    %v516 = vmul.f32 %v386, %v508
    %v518 = vsel %vm203, %v187, 0
    %520 = vmatpush.msra.mxu0 0.0
    %521 = vmatpush.msra.mxu0 0.0
    %522 = vmatpush.msra.mxu0 0.0
    %523 = vmatpush.msra.mxu0 0.0
    %524 = vmatpush.msra.mxu0 0.0
    %525 = vmatpush.msra.mxu0 0.0
    %526 = vmatpush.msra.mxu0 0.0
    %527 = vmatpush.msra.mxu0 0.0
    %528 = vmatpush.msra.mxu0 0.0
    %529 = vmatpush.msra.mxu0 0.0
    %530 = vmatpush.msra.mxu0 0.0
    %531 = vmatpush.msra.mxu0 0.0
    %532 = vmatpush.msra.mxu0 %v142
    %533 = vmatpush.msra.mxu0 %v141
    %534 = vmatpush.msra.mxu0 %v140
    %535 = vmatpush.msra.mxu0 %v139
    %536 = vmatmul.f32.gmra.mxu0 %v518
    %v537 = vpop.f32.mrf.mxu0
    %v538 = vadd.f32 0.0, %v537
    %539 = vdwg.mxu0
    %v541 = vsel %vm203, %v188, 0
    %543 = vmatpush.msra.mxu0 0.0
    %544 = vmatpush.msra.mxu0 0.0
    %545 = vmatpush.msra.mxu0 0.0
    %546 = vmatpush.msra.mxu0 0.0
    %547 = vmatpush.msra.mxu0 0.0
    %548 = vmatpush.msra.mxu0 0.0
    %549 = vmatpush.msra.mxu0 0.0
    %550 = vmatpush.msra.mxu0 0.0
    %551 = vmatpush.msra.mxu0 0.0
    %552 = vmatpush.msra.mxu0 0.0
    %553 = vmatpush.msra.mxu0 0.0
    %554 = vmatpush.msra.mxu0 0.0
    %555 = vmatpush.msra.mxu0 %v146
    %556 = vmatpush.msra.mxu0 %v145
    %557 = vmatpush.msra.mxu0 %v144
    %558 = vmatpush.msra.mxu0 %v143
    %559 = vmatmul.f32.gmra.mxu0 %v541
    %v560 = vpop.f32.mrf.mxu0
    %v561 = vadd.f32 0.0, %v560
    %562 = vdwg.mxu0
    %v564 = vsel %vm203, %v189, 0
    %566 = vmatpush.msra.mxu0 0.0
    %567 = vmatpush.msra.mxu0 0.0
    %568 = vmatpush.msra.mxu0 0.0
    %569 = vmatpush.msra.mxu0 0.0
    %570 = vmatpush.msra.mxu0 0.0
    %571 = vmatpush.msra.mxu0 0.0
    %572 = vmatpush.msra.mxu0 0.0
    %573 = vmatpush.msra.mxu0 0.0
    %574 = vmatpush.msra.mxu0 0.0
    %575 = vmatpush.msra.mxu0 0.0
    %576 = vmatpush.msra.mxu0 0.0
    %577 = vmatpush.msra.mxu0 0.0
    %578 = vmatpush.msra.mxu0 %v150
    %579 = vmatpush.msra.mxu0 %v149
    %580 = vmatpush.msra.mxu0 %v148
    %581 = vmatpush.msra.mxu0 %v147
    %582 = vmatmul.f32.gmra.mxu0 %v564
    %v583 = vpop.f32.mrf.mxu0
    %v584 = vadd.f32 0.0, %v583
    %585 = vdwg.mxu0
    %v587 = vsel %vm203, %v190, 0
    %589 = vmatpush.msra.mxu0 0.0
    %590 = vmatpush.msra.mxu0 0.0
    %591 = vmatpush.msra.mxu0 0.0
    %592 = vmatpush.msra.mxu0 0.0
    %593 = vmatpush.msra.mxu0 0.0
    %594 = vmatpush.msra.mxu0 0.0
    %595 = vmatpush.msra.mxu0 0.0
    %596 = vmatpush.msra.mxu0 0.0
    %597 = vmatpush.msra.mxu0 0.0
    %598 = vmatpush.msra.mxu0 0.0
    %599 = vmatpush.msra.mxu0 0.0
    %600 = vmatpush.msra.mxu0 0.0
    %601 = vmatpush.msra.mxu0 %v154
    %602 = vmatpush.msra.mxu0 %v153
    %603 = vmatpush.msra.mxu0 %v152
    %604 = vmatpush.msra.mxu0 %v151
    %605 = vmatmul.f32.gmra.mxu0 %v587
    %v606 = vpop.f32.mrf.mxu0
    %v607 = vadd.f32 0.0, %v606
    %608 = vdwg.mxu0
    %v610 = vsel %vm203, %v191, 0
    %612 = vmatpush.msra.mxu0 0.0
    %613 = vmatpush.msra.mxu0 0.0
    %614 = vmatpush.msra.mxu0 0.0
    %615 = vmatpush.msra.mxu0 0.0
    %616 = vmatpush.msra.mxu0 0.0
    %617 = vmatpush.msra.mxu0 0.0
    %618 = vmatpush.msra.mxu0 0.0
    %619 = vmatpush.msra.mxu0 0.0
    %620 = vmatpush.msra.mxu0 0.0
    %621 = vmatpush.msra.mxu0 0.0
    %622 = vmatpush.msra.mxu0 0.0
    %623 = vmatpush.msra.mxu0 0.0
    %624 = vmatpush.msra.mxu0 %v158
    %625 = vmatpush.msra.mxu0 %v157
    %626 = vmatpush.msra.mxu0 %v156
    %627 = vmatpush.msra.mxu0 %v155
    %628 = vmatmul.f32.gmra.mxu0 %v610
    %v629 = vpop.f32.mrf.mxu0
    %v630 = vadd.f32 0.0, %v629
    %631 = vdwg.mxu0
    %v633 = vsel %vm203, %v192, 0
    %635 = vmatpush.msra.mxu0 0.0
    %636 = vmatpush.msra.mxu0 0.0
    %637 = vmatpush.msra.mxu0 0.0
    %638 = vmatpush.msra.mxu0 0.0
    %639 = vmatpush.msra.mxu0 0.0
    %640 = vmatpush.msra.mxu0 0.0
    %641 = vmatpush.msra.mxu0 0.0
    %642 = vmatpush.msra.mxu0 0.0
    %643 = vmatpush.msra.mxu0 0.0
    %644 = vmatpush.msra.mxu0 0.0
    %645 = vmatpush.msra.mxu0 0.0
    %646 = vmatpush.msra.mxu0 0.0
    %647 = vmatpush.msra.mxu0 %v162
    %648 = vmatpush.msra.mxu0 %v161
    %649 = vmatpush.msra.mxu0 %v160
    %650 = vmatpush.msra.mxu0 %v159
    %651 = vmatmul.f32.gmra.mxu0 %v633
    %v652 = vpop.f32.mrf.mxu0
    %v653 = vadd.f32 0.0, %v652
    %654 = vdwg.mxu0
    %v656 = vsel %vm203, %v193, 0
    %658 = vmatpush.msra.mxu0 0.0
    %659 = vmatpush.msra.mxu0 0.0
    %660 = vmatpush.msra.mxu0 0.0
    %661 = vmatpush.msra.mxu0 0.0
    %662 = vmatpush.msra.mxu0 0.0
    %663 = vmatpush.msra.mxu0 0.0
    %664 = vmatpush.msra.mxu0 0.0
    %665 = vmatpush.msra.mxu0 0.0
    %666 = vmatpush.msra.mxu0 0.0
    %667 = vmatpush.msra.mxu0 0.0
    %668 = vmatpush.msra.mxu0 0.0
    %669 = vmatpush.msra.mxu0 0.0
    %670 = vmatpush.msra.mxu0 %v166
    %671 = vmatpush.msra.mxu0 %v165
    %672 = vmatpush.msra.mxu0 %v164
    %673 = vmatpush.msra.mxu0 %v163
    %674 = vmatmul.f32.gmra.mxu0 %v656
    %v675 = vpop.f32.mrf.mxu0
    %v676 = vadd.f32 0.0, %v675
    %677 = vdwg.mxu0
    %v679 = vsel %vm203, %v194, 0
    %681 = vmatpush.msra.mxu0 0.0
    %682 = vmatpush.msra.mxu0 0.0
    %683 = vmatpush.msra.mxu0 0.0
    %684 = vmatpush.msra.mxu0 0.0
    %685 = vmatpush.msra.mxu0 0.0
    %686 = vmatpush.msra.mxu0 0.0
    %687 = vmatpush.msra.mxu0 0.0
    %688 = vmatpush.msra.mxu0 0.0
    %689 = vmatpush.msra.mxu0 0.0
    %690 = vmatpush.msra.mxu0 0.0
    %691 = vmatpush.msra.mxu0 0.0
    %692 = vmatpush.msra.mxu0 0.0
    %693 = vmatpush.msra.mxu0 %v170
    %694 = vmatpush.msra.mxu0 %v169
    %695 = vmatpush.msra.mxu0 %v168
    %696 = vmatpush.msra.mxu0 %v167
    %697 = vmatmul.f32.gmra.mxu0 %v679
    %v698 = vpop.f32.mrf.mxu0
    %v699 = vadd.f32 0.0, %v698
    %700 = vdwg.mxu0
    %v701 = vmul.f32 %v538, %v538
    %v702 = vmul.f32 %v561, %v561
    %v703 = vmul.f32 %v584, %v584
    %v704 = vmul.f32 %v607, %v607
    %v705 = vmul.f32 %v630, %v630
    %v706 = vmul.f32 %v653, %v653
    %v707 = vmul.f32 %v676, %v676
    %v708 = vmul.f32 %v699, %v699
    %v709 = vsel %vm396, %v701, 0.0
    %710 = vadd.xlane.f32.xlu0 %v709
    %v711 = vpop.xlane.xlu0 %710
    %v712 = vsel %vm396, %v702, 0.0
    %713 = vadd.xlane.f32.xlu0 %v712
    %v714 = vpop.xlane.xlu0 %713
    %v715 = vsel %vm396, %v703, 0.0
    %716 = vadd.xlane.f32.xlu0 %v715
    %v717 = vpop.xlane.xlu0 %716
    %v718 = vsel %vm396, %v704, 0.0
    %719 = vadd.xlane.f32.xlu0 %v718
    %v720 = vpop.xlane.xlu0 %719
    %v721 = vsel %vm396, %v705, 0.0
    %722 = vadd.xlane.f32.xlu0 %v721
    %v723 = vpop.xlane.xlu0 %722
    %v724 = vsel %vm396, %v706, 0.0
    %725 = vadd.xlane.f32.xlu0 %v724
    %v726 = vpop.xlane.xlu0 %725
    %v727 = vsel %vm396, %v707, 0.0
    %728 = vadd.xlane.f32.xlu0 %v727
    %v729 = vpop.xlane.xlu0 %728
    %v730 = vsel %vm396, %v708, 0.0
    %731 = vadd.xlane.f32.xlu0 %v730
    %v732 = vpop.xlane.xlu0 %731
    %v733 = vadd.f32 %v711, 1e-12
    %v734 = vadd.f32 %v714, 1e-12
    %v735 = vadd.f32 %v717, 1e-12
    %v736 = vadd.f32 %v720, 1e-12
    %v737 = vadd.f32 %v723, 1e-12
    %v738 = vadd.f32 %v726, 1e-12
    %v739 = vadd.f32 %v729, 1e-12
    %v740 = vadd.f32 %v732, 1e-12
    %v741 = vrsqrt.pop %v733
    %v742 = vmul.f32 %v741, %v733
    %v743 = vmul.f32 %v742, %v741
    %v744 = vmul.f32 0.5, %v743
    %v745 = vsub.f32 1.5, %v744
    %v746 = vmul.f32 %v741, %v745
    %vm747 = vweird.f32 %v733
    %vm748 = vweird.f32 %v741
    %vm749 = vmor %vm747, %vm748
    %v750 = vsel %vm749, %v741, %v746
    %v751 = vrsqrt.pop %v734
    %v752 = vmul.f32 %v751, %v734
    %v753 = vmul.f32 %v752, %v751
    %v754 = vmul.f32 0.5, %v753
    %v755 = vsub.f32 1.5, %v754
    %v756 = vmul.f32 %v751, %v755
    %vm757 = vweird.f32 %v734
    %vm758 = vweird.f32 %v751
    %vm759 = vmor %vm757, %vm758
    %v760 = vsel %vm759, %v751, %v756
    %v761 = vrsqrt.pop %v735
    %v762 = vmul.f32 %v761, %v735
    %v763 = vmul.f32 %v762, %v761
    %v764 = vmul.f32 0.5, %v763
    %v765 = vsub.f32 1.5, %v764
    %v766 = vmul.f32 %v761, %v765
    %vm767 = vweird.f32 %v735
    %vm768 = vweird.f32 %v761
    %vm769 = vmor %vm767, %vm768
    %v770 = vsel %vm769, %v761, %v766
    %v771 = vrsqrt.pop %v736
    %v772 = vmul.f32 %v771, %v736
    %v773 = vmul.f32 %v772, %v771
    %v774 = vmul.f32 0.5, %v773
    %v775 = vsub.f32 1.5, %v774
    %v776 = vmul.f32 %v771, %v775
    %vm777 = vweird.f32 %v736
    %vm778 = vweird.f32 %v771
    %vm779 = vmor %vm777, %vm778
    %v780 = vsel %vm779, %v771, %v776
    %v781 = vrsqrt.pop %v737
    %v782 = vmul.f32 %v781, %v737
    %v783 = vmul.f32 %v782, %v781
    %v784 = vmul.f32 0.5, %v783
    %v785 = vsub.f32 1.5, %v784
    %v786 = vmul.f32 %v781, %v785
    %vm787 = vweird.f32 %v737
    %vm788 = vweird.f32 %v781
    %vm789 = vmor %vm787, %vm788
    %v790 = vsel %vm789, %v781, %v786
    %v791 = vrsqrt.pop %v738
    %v792 = vmul.f32 %v791, %v738
    %v793 = vmul.f32 %v792, %v791
    %v794 = vmul.f32 0.5, %v793
    %v795 = vsub.f32 1.5, %v794
    %v796 = vmul.f32 %v791, %v795
    %vm797 = vweird.f32 %v738
    %vm798 = vweird.f32 %v791
    %vm799 = vmor %vm797, %vm798
    %v800 = vsel %vm799, %v791, %v796
    %v801 = vrsqrt.pop %v739
    %v802 = vmul.f32 %v801, %v739
    %v803 = vmul.f32 %v802, %v801
    %v804 = vmul.f32 0.5, %v803
    %v805 = vsub.f32 1.5, %v804
    %v806 = vmul.f32 %v801, %v805
    %vm807 = vweird.f32 %v739
    %vm808 = vweird.f32 %v801
    %vm809 = vmor %vm807, %vm808
    %v810 = vsel %vm809, %v801, %v806
    %v811 = vrsqrt.pop %v740
    %v812 = vmul.f32 %v811, %v740
    %v813 = vmul.f32 %v812, %v811
    %v814 = vmul.f32 0.5, %v813
    %v815 = vsub.f32 1.5, %v814
    %v816 = vmul.f32 %v811, %v815
    %vm817 = vweird.f32 %v740
    %vm818 = vweird.f32 %v811
    %vm819 = vmor %vm817, %vm818
    %v820 = vsel %vm819, %v811, %v816
    %v821 = vmul.f32 %v538, %v750
    %v822 = vmul.f32 %v561, %v760
    %v823 = vmul.f32 %v584, %v770
    %v824 = vmul.f32 %v607, %v780
    %v825 = vmul.f32 %v630, %v790
    %v826 = vmul.f32 %v653, %v800
    %v827 = vmul.f32 %v676, %v810
    %v828 = vmul.f32 %v699, %v820
    %v830 = vsel %vm203, %v195, 0
    %832 = vmatpush.msra.mxu0 0.0
    %833 = vmatpush.msra.mxu0 0.0
    %834 = vmatpush.msra.mxu0 0.0
    %835 = vmatpush.msra.mxu0 0.0
    %836 = vmatpush.msra.mxu0 0.0
    %837 = vmatpush.msra.mxu0 0.0
    %838 = vmatpush.msra.mxu0 0.0
    %839 = vmatpush.msra.mxu0 0.0
    %840 = vmatpush.msra.mxu0 0.0
    %841 = vmatpush.msra.mxu0 0.0
    %842 = vmatpush.msra.mxu0 0.0
    %843 = vmatpush.msra.mxu0 0.0
    %844 = vmatpush.msra.mxu0 %v142
    %845 = vmatpush.msra.mxu0 %v141
    %846 = vmatpush.msra.mxu0 %v140
    %847 = vmatpush.msra.mxu0 %v139
    %848 = vmatmul.f32.gmra.mxu0 %v830
    %v849 = vpop.f32.mrf.mxu0
    %v850 = vadd.f32 0.0, %v849
    %851 = vdwg.mxu0
    %v853 = vsel %vm203, %v196, 0
    %855 = vmatpush.msra.mxu0 0.0
    %856 = vmatpush.msra.mxu0 0.0
    %857 = vmatpush.msra.mxu0 0.0
    %858 = vmatpush.msra.mxu0 0.0
    %859 = vmatpush.msra.mxu0 0.0
    %860 = vmatpush.msra.mxu0 0.0
    %861 = vmatpush.msra.mxu0 0.0
    %862 = vmatpush.msra.mxu0 0.0
    %863 = vmatpush.msra.mxu0 0.0
    %864 = vmatpush.msra.mxu0 0.0
    %865 = vmatpush.msra.mxu0 0.0
    %866 = vmatpush.msra.mxu0 0.0
    %867 = vmatpush.msra.mxu0 %v146
    %868 = vmatpush.msra.mxu0 %v145
    %869 = vmatpush.msra.mxu0 %v144
    %870 = vmatpush.msra.mxu0 %v143
    %871 = vmatmul.f32.gmra.mxu0 %v853
    %v872 = vpop.f32.mrf.mxu0
    %v873 = vadd.f32 0.0, %v872
    %874 = vdwg.mxu0
    %v876 = vsel %vm203, %v197, 0
    %878 = vmatpush.msra.mxu0 0.0
    %879 = vmatpush.msra.mxu0 0.0
    %880 = vmatpush.msra.mxu0 0.0
    %881 = vmatpush.msra.mxu0 0.0
    %882 = vmatpush.msra.mxu0 0.0
    %883 = vmatpush.msra.mxu0 0.0
    %884 = vmatpush.msra.mxu0 0.0
    %885 = vmatpush.msra.mxu0 0.0
    %886 = vmatpush.msra.mxu0 0.0
    %887 = vmatpush.msra.mxu0 0.0
    %888 = vmatpush.msra.mxu0 0.0
    %889 = vmatpush.msra.mxu0 0.0
    %890 = vmatpush.msra.mxu0 %v150
    %891 = vmatpush.msra.mxu0 %v149
    %892 = vmatpush.msra.mxu0 %v148
    %893 = vmatpush.msra.mxu0 %v147
    %894 = vmatmul.f32.gmra.mxu0 %v876
    %v895 = vpop.f32.mrf.mxu0
    %v896 = vadd.f32 0.0, %v895
    %897 = vdwg.mxu0
    %v899 = vsel %vm203, %v198, 0
    %901 = vmatpush.msra.mxu0 0.0
    %902 = vmatpush.msra.mxu0 0.0
    %903 = vmatpush.msra.mxu0 0.0
    %904 = vmatpush.msra.mxu0 0.0
    %905 = vmatpush.msra.mxu0 0.0
    %906 = vmatpush.msra.mxu0 0.0
    %907 = vmatpush.msra.mxu0 0.0
    %908 = vmatpush.msra.mxu0 0.0
    %909 = vmatpush.msra.mxu0 0.0
    %910 = vmatpush.msra.mxu0 0.0
    %911 = vmatpush.msra.mxu0 0.0
    %912 = vmatpush.msra.mxu0 0.0
    %913 = vmatpush.msra.mxu0 %v154
    %914 = vmatpush.msra.mxu0 %v153
    %915 = vmatpush.msra.mxu0 %v152
    %916 = vmatpush.msra.mxu0 %v151
    %917 = vmatmul.f32.gmra.mxu0 %v899
    %v918 = vpop.f32.mrf.mxu0
    %v919 = vadd.f32 0.0, %v918
    %920 = vdwg.mxu0
    %v922 = vsel %vm203, %v199, 0
    %924 = vmatpush.msra.mxu0 0.0
    %925 = vmatpush.msra.mxu0 0.0
    %926 = vmatpush.msra.mxu0 0.0
    %927 = vmatpush.msra.mxu0 0.0
    %928 = vmatpush.msra.mxu0 0.0
    %929 = vmatpush.msra.mxu0 0.0
    %930 = vmatpush.msra.mxu0 0.0
    %931 = vmatpush.msra.mxu0 0.0
    %932 = vmatpush.msra.mxu0 0.0
    %933 = vmatpush.msra.mxu0 0.0
    %934 = vmatpush.msra.mxu0 0.0
    %935 = vmatpush.msra.mxu0 0.0
    %936 = vmatpush.msra.mxu0 %v158
    %937 = vmatpush.msra.mxu0 %v157
    %938 = vmatpush.msra.mxu0 %v156
    %939 = vmatpush.msra.mxu0 %v155
    %940 = vmatmul.f32.gmra.mxu0 %v922
    %v941 = vpop.f32.mrf.mxu0
    %v942 = vadd.f32 0.0, %v941
    %943 = vdwg.mxu0
    %v945 = vsel %vm203, %v200, 0
    %947 = vmatpush.msra.mxu0 0.0
    %948 = vmatpush.msra.mxu0 0.0
    %949 = vmatpush.msra.mxu0 0.0
    %950 = vmatpush.msra.mxu0 0.0
    %951 = vmatpush.msra.mxu0 0.0
    %952 = vmatpush.msra.mxu0 0.0
    %953 = vmatpush.msra.mxu0 0.0
    %954 = vmatpush.msra.mxu0 0.0
    %955 = vmatpush.msra.mxu0 0.0
    %956 = vmatpush.msra.mxu0 0.0
    %957 = vmatpush.msra.mxu0 0.0
    %958 = vmatpush.msra.mxu0 0.0
    %959 = vmatpush.msra.mxu0 %v162
    %960 = vmatpush.msra.mxu0 %v161
    %961 = vmatpush.msra.mxu0 %v160
    %962 = vmatpush.msra.mxu0 %v159
    %963 = vmatmul.f32.gmra.mxu0 %v945
    %v964 = vpop.f32.mrf.mxu0
    %v965 = vadd.f32 0.0, %v964
    %966 = vdwg.mxu0
    %v968 = vsel %vm203, %v201, 0
    %970 = vmatpush.msra.mxu0 0.0
    %971 = vmatpush.msra.mxu0 0.0
    %972 = vmatpush.msra.mxu0 0.0
    %973 = vmatpush.msra.mxu0 0.0
    %974 = vmatpush.msra.mxu0 0.0
    %975 = vmatpush.msra.mxu0 0.0
    %976 = vmatpush.msra.mxu0 0.0
    %977 = vmatpush.msra.mxu0 0.0
    %978 = vmatpush.msra.mxu0 0.0
    %979 = vmatpush.msra.mxu0 0.0
    %980 = vmatpush.msra.mxu0 0.0
    %981 = vmatpush.msra.mxu0 0.0
    %982 = vmatpush.msra.mxu0 %v166
    %983 = vmatpush.msra.mxu0 %v165
    %984 = vmatpush.msra.mxu0 %v164
    %985 = vmatpush.msra.mxu0 %v163
    %986 = vmatmul.f32.gmra.mxu0 %v968
    %v987 = vpop.f32.mrf.mxu0
    %v988 = vadd.f32 0.0, %v987
    %989 = vdwg.mxu0
    %v991 = vsel %vm203, %v202, 0
    %993 = vmatpush.msra.mxu0 0.0
    %994 = vmatpush.msra.mxu0 0.0
    %995 = vmatpush.msra.mxu0 0.0
    %996 = vmatpush.msra.mxu0 0.0
    %997 = vmatpush.msra.mxu0 0.0
    %998 = vmatpush.msra.mxu0 0.0
    %999 = vmatpush.msra.mxu0 0.0
    %1000 = vmatpush.msra.mxu0 0.0
    %1001 = vmatpush.msra.mxu0 0.0
    %1002 = vmatpush.msra.mxu0 0.0
    %1003 = vmatpush.msra.mxu0 0.0
    %1004 = vmatpush.msra.mxu0 0.0
    %1005 = vmatpush.msra.mxu0 %v170
    %1006 = vmatpush.msra.mxu0 %v169
    %1007 = vmatpush.msra.mxu0 %v168
    %1008 = vmatpush.msra.mxu0 %v167
    %1009 = vmatmul.f32.gmra.mxu0 %v991
    %v1010 = vpop.f32.mrf.mxu0
    %v1011 = vadd.f32 0.0, %v1010
    %1012 = vdwg.mxu0
    %v1013 = vmul.f32 %v850, %v850
    %v1014 = vmul.f32 %v873, %v873
    %v1015 = vmul.f32 %v896, %v896
    %v1016 = vmul.f32 %v919, %v919
    %v1017 = vmul.f32 %v942, %v942
    %v1018 = vmul.f32 %v965, %v965
    %v1019 = vmul.f32 %v988, %v988
    %v1020 = vmul.f32 %v1011, %v1011
    %v1021 = vsel %vm396, %v1013, 0.0
    %1022 = vadd.xlane.f32.xlu0 %v1021
    %v1023 = vpop.xlane.xlu0 %1022
    %v1024 = vsel %vm396, %v1014, 0.0
    %1025 = vadd.xlane.f32.xlu0 %v1024
    %v1026 = vpop.xlane.xlu0 %1025
    %v1027 = vsel %vm396, %v1015, 0.0
    %1028 = vadd.xlane.f32.xlu0 %v1027
    %v1029 = vpop.xlane.xlu0 %1028
    %v1030 = vsel %vm396, %v1016, 0.0
    %1031 = vadd.xlane.f32.xlu0 %v1030
    %v1032 = vpop.xlane.xlu0 %1031
    %v1033 = vsel %vm396, %v1017, 0.0
    %1034 = vadd.xlane.f32.xlu0 %v1033
    %v1035 = vpop.xlane.xlu0 %1034
    %v1036 = vsel %vm396, %v1018, 0.0
    %1037 = vadd.xlane.f32.xlu0 %v1036
    %v1038 = vpop.xlane.xlu0 %1037
    %v1039 = vsel %vm396, %v1019, 0.0
    %1040 = vadd.xlane.f32.xlu0 %v1039
    %v1041 = vpop.xlane.xlu0 %1040
    %v1042 = vsel %vm396, %v1020, 0.0
    %1043 = vadd.xlane.f32.xlu0 %v1042
    %v1044 = vpop.xlane.xlu0 %1043
    %v1045 = vadd.f32 %v1023, 1e-12
    %v1046 = vadd.f32 %v1026, 1e-12
    %v1047 = vadd.f32 %v1029, 1e-12
    %v1048 = vadd.f32 %v1032, 1e-12
    %v1049 = vadd.f32 %v1035, 1e-12
    %v1050 = vadd.f32 %v1038, 1e-12
    %v1051 = vadd.f32 %v1041, 1e-12
    %v1052 = vadd.f32 %v1044, 1e-12
    %v1053 = vrsqrt.pop %v1045
    %v1054 = vmul.f32 %v1053, %v1045
    %v1055 = vmul.f32 %v1054, %v1053
    %v1056 = vmul.f32 0.5, %v1055
    %v1057 = vsub.f32 1.5, %v1056
    %v1058 = vmul.f32 %v1053, %v1057
    %vm1059 = vweird.f32 %v1045
    %vm1060 = vweird.f32 %v1053
    %vm1061 = vmor %vm1059, %vm1060
    %v1062 = vsel %vm1061, %v1053, %v1058
    %v1063 = vrsqrt.pop %v1046
    %v1064 = vmul.f32 %v1063, %v1046
    %v1065 = vmul.f32 %v1064, %v1063
    %v1066 = vmul.f32 0.5, %v1065
    %v1067 = vsub.f32 1.5, %v1066
    %v1068 = vmul.f32 %v1063, %v1067
    %vm1069 = vweird.f32 %v1046
    %vm1070 = vweird.f32 %v1063
    %vm1071 = vmor %vm1069, %vm1070
    %v1072 = vsel %vm1071, %v1063, %v1068
    %v1073 = vrsqrt.pop %v1047
    %v1074 = vmul.f32 %v1073, %v1047
    %v1075 = vmul.f32 %v1074, %v1073
    %v1076 = vmul.f32 0.5, %v1075
    %v1077 = vsub.f32 1.5, %v1076
    %v1078 = vmul.f32 %v1073, %v1077
    %vm1079 = vweird.f32 %v1047
    %vm1080 = vweird.f32 %v1073
    %vm1081 = vmor %vm1079, %vm1080
    %v1082 = vsel %vm1081, %v1073, %v1078
    %v1083 = vrsqrt.pop %v1048
    %v1084 = vmul.f32 %v1083, %v1048
    %v1085 = vmul.f32 %v1084, %v1083
    %v1086 = vmul.f32 0.5, %v1085
    %v1087 = vsub.f32 1.5, %v1086
    %v1088 = vmul.f32 %v1083, %v1087
    %vm1089 = vweird.f32 %v1048
    %vm1090 = vweird.f32 %v1083
    %vm1091 = vmor %vm1089, %vm1090
    %v1092 = vsel %vm1091, %v1083, %v1088
    %v1093 = vrsqrt.pop %v1049
    %v1094 = vmul.f32 %v1093, %v1049
    %v1095 = vmul.f32 %v1094, %v1093
    %v1096 = vmul.f32 0.5, %v1095
    %v1097 = vsub.f32 1.5, %v1096
    %v1098 = vmul.f32 %v1093, %v1097
    %vm1099 = vweird.f32 %v1049
    %vm1100 = vweird.f32 %v1093
    %vm1101 = vmor %vm1099, %vm1100
    %v1102 = vsel %vm1101, %v1093, %v1098
    %v1103 = vrsqrt.pop %v1050
    %v1104 = vmul.f32 %v1103, %v1050
    %v1105 = vmul.f32 %v1104, %v1103
    %v1106 = vmul.f32 0.5, %v1105
    %v1107 = vsub.f32 1.5, %v1106
    %v1108 = vmul.f32 %v1103, %v1107
    %vm1109 = vweird.f32 %v1050
    %vm1110 = vweird.f32 %v1103
    %vm1111 = vmor %vm1109, %vm1110
    %v1112 = vsel %vm1111, %v1103, %v1108
    %v1113 = vrsqrt.pop %v1051
    %v1114 = vmul.f32 %v1113, %v1051
    %v1115 = vmul.f32 %v1114, %v1113
    %v1116 = vmul.f32 0.5, %v1115
    %v1117 = vsub.f32 1.5, %v1116
    %v1118 = vmul.f32 %v1113, %v1117
    %vm1119 = vweird.f32 %v1051
    %vm1120 = vweird.f32 %v1113
    %vm1121 = vmor %vm1119, %vm1120
    %v1122 = vsel %vm1121, %v1113, %v1118
    %v1123 = vrsqrt.pop %v1052
    %v1124 = vmul.f32 %v1123, %v1052
    %v1125 = vmul.f32 %v1124, %v1123
    %v1126 = vmul.f32 0.5, %v1125
    %v1127 = vsub.f32 1.5, %v1126
    %v1128 = vmul.f32 %v1123, %v1127
    %vm1129 = vweird.f32 %v1052
    %vm1130 = vweird.f32 %v1123
    %vm1131 = vmor %vm1129, %vm1130
    %v1132 = vsel %vm1131, %v1123, %v1128
    %v1133 = vmul.f32 %v850, %v1062
    %v1134 = vmul.f32 %v873, %v1072
    %v1135 = vmul.f32 %v896, %v1082
    %v1136 = vmul.f32 %v919, %v1092
    %v1137 = vmul.f32 %v942, %v1102
    %v1138 = vmul.f32 %v965, %v1112
    %v1139 = vmul.f32 %v988, %v1122
    %v1140 = vmul.f32 %v1011, %v1132
    %v1141 = vmul.f32 %v171, %v171
    %v1142 = vmul.f32 %v172, %v172
    %v1143 = vmul.f32 %v173, %v173
    %v1144 = vmul.f32 %v174, %v174
    %v1145 = vmul.f32 %v175, %v175
    %v1146 = vmul.f32 %v176, %v176
    %v1147 = vmul.f32 %v177, %v177
    %v1148 = vmul.f32 %v178, %v178
    %v1149 = vsel %vm396, %v1141, 0.0
    %1150 = vadd.xlane.f32.xlu0 %v1149
    %v1151 = vpop.xlane.xlu0 %1150
    %v1152 = vsel %vm396, %v1142, 0.0
    %1153 = vadd.xlane.f32.xlu0 %v1152
    %v1154 = vpop.xlane.xlu0 %1153
    %v1155 = vsel %vm396, %v1143, 0.0
    %1156 = vadd.xlane.f32.xlu0 %v1155
    %v1157 = vpop.xlane.xlu0 %1156
    %v1158 = vsel %vm396, %v1144, 0.0
    %1159 = vadd.xlane.f32.xlu0 %v1158
    %v1160 = vpop.xlane.xlu0 %1159
    %v1161 = vsel %vm396, %v1145, 0.0
    %1162 = vadd.xlane.f32.xlu0 %v1161
    %v1163 = vpop.xlane.xlu0 %1162
    %v1164 = vsel %vm396, %v1146, 0.0
    %1165 = vadd.xlane.f32.xlu0 %v1164
    %v1166 = vpop.xlane.xlu0 %1165
    %v1167 = vsel %vm396, %v1147, 0.0
    %1168 = vadd.xlane.f32.xlu0 %v1167
    %v1169 = vpop.xlane.xlu0 %1168
    %v1170 = vsel %vm396, %v1148, 0.0
    %1171 = vadd.xlane.f32.xlu0 %v1170
    %v1172 = vpop.xlane.xlu0 %1171
    %v1173 = vadd.f32 %v1151, 1e-12
    %v1174 = vadd.f32 %v1154, 1e-12
    %v1175 = vadd.f32 %v1157, 1e-12
    %v1176 = vadd.f32 %v1160, 1e-12
    %v1177 = vadd.f32 %v1163, 1e-12
    %v1178 = vadd.f32 %v1166, 1e-12
    %v1179 = vadd.f32 %v1169, 1e-12
    %v1180 = vadd.f32 %v1172, 1e-12
    %v1181 = vrsqrt.pop %v1173
    %v1182 = vmul.f32 %v1181, %v1173
    %v1183 = vmul.f32 %v1182, %v1181
    %v1184 = vmul.f32 0.5, %v1183
    %v1185 = vsub.f32 1.5, %v1184
    %v1186 = vmul.f32 %v1181, %v1185
    %vm1187 = vweird.f32 %v1173
    %vm1188 = vweird.f32 %v1181
    %vm1189 = vmor %vm1187, %vm1188
    %v1190 = vsel %vm1189, %v1181, %v1186
    %v1191 = vrsqrt.pop %v1174
    %v1192 = vmul.f32 %v1191, %v1174
    %v1193 = vmul.f32 %v1192, %v1191
    %v1194 = vmul.f32 0.5, %v1193
    %v1195 = vsub.f32 1.5, %v1194
    %v1196 = vmul.f32 %v1191, %v1195
    %vm1197 = vweird.f32 %v1174
    %vm1198 = vweird.f32 %v1191
    %vm1199 = vmor %vm1197, %vm1198
    %v1200 = vsel %vm1199, %v1191, %v1196
    %v1201 = vrsqrt.pop %v1175
    %v1202 = vmul.f32 %v1201, %v1175
    %v1203 = vmul.f32 %v1202, %v1201
    %v1204 = vmul.f32 0.5, %v1203
    %v1205 = vsub.f32 1.5, %v1204
    %v1206 = vmul.f32 %v1201, %v1205
    %vm1207 = vweird.f32 %v1175
    %vm1208 = vweird.f32 %v1201
    %vm1209 = vmor %vm1207, %vm1208
    %v1210 = vsel %vm1209, %v1201, %v1206
    %v1211 = vrsqrt.pop %v1176
    %v1212 = vmul.f32 %v1211, %v1176
    %v1213 = vmul.f32 %v1212, %v1211
    %v1214 = vmul.f32 0.5, %v1213
    %v1215 = vsub.f32 1.5, %v1214
    %v1216 = vmul.f32 %v1211, %v1215
    %vm1217 = vweird.f32 %v1176
    %vm1218 = vweird.f32 %v1211
    %vm1219 = vmor %vm1217, %vm1218
    %v1220 = vsel %vm1219, %v1211, %v1216
    %v1221 = vrsqrt.pop %v1177
    %v1222 = vmul.f32 %v1221, %v1177
    %v1223 = vmul.f32 %v1222, %v1221
    %v1224 = vmul.f32 0.5, %v1223
    %v1225 = vsub.f32 1.5, %v1224
    %v1226 = vmul.f32 %v1221, %v1225
    %vm1227 = vweird.f32 %v1177
    %vm1228 = vweird.f32 %v1221
    %vm1229 = vmor %vm1227, %vm1228
    %v1230 = vsel %vm1229, %v1221, %v1226
    %v1231 = vrsqrt.pop %v1178
    %v1232 = vmul.f32 %v1231, %v1178
    %v1233 = vmul.f32 %v1232, %v1231
    %v1234 = vmul.f32 0.5, %v1233
    %v1235 = vsub.f32 1.5, %v1234
    %v1236 = vmul.f32 %v1231, %v1235
    %vm1237 = vweird.f32 %v1178
    %vm1238 = vweird.f32 %v1231
    %vm1239 = vmor %vm1237, %vm1238
    %v1240 = vsel %vm1239, %v1231, %v1236
    %v1241 = vrsqrt.pop %v1179
    %v1242 = vmul.f32 %v1241, %v1179
    %v1243 = vmul.f32 %v1242, %v1241
    %v1244 = vmul.f32 0.5, %v1243
    %v1245 = vsub.f32 1.5, %v1244
    %v1246 = vmul.f32 %v1241, %v1245
    %vm1247 = vweird.f32 %v1179
    %vm1248 = vweird.f32 %v1241
    %vm1249 = vmor %vm1247, %vm1248
    %v1250 = vsel %vm1249, %v1241, %v1246
    %v1251 = vrsqrt.pop %v1180
    %v1252 = vmul.f32 %v1251, %v1180
    %v1253 = vmul.f32 %v1252, %v1251
    %v1254 = vmul.f32 0.5, %v1253
    %v1255 = vsub.f32 1.5, %v1254
    %v1256 = vmul.f32 %v1251, %v1255
    %vm1257 = vweird.f32 %v1180
    %vm1258 = vweird.f32 %v1251
    %vm1259 = vmor %vm1257, %vm1258
    %v1260 = vsel %vm1259, %v1251, %v1256
    %v1261 = vmul.f32 %v171, %v1190
    %v1262 = vmul.f32 %v172, %v1200
    %v1263 = vmul.f32 %v173, %v1210
    %v1264 = vmul.f32 %v174, %v1220
    %v1265 = vmul.f32 %v175, %v1230
    %v1266 = vmul.f32 %v176, %v1240
    %v1267 = vmul.f32 %v177, %v1250
    %v1268 = vmul.f32 %v178, %v1260
    %v1269 = vadd.f32 %v509, %v1261
    %v1270 = vadd.f32 %v510, %v1262
    %v1271 = vadd.f32 %v511, %v1263
    %v1272 = vadd.f32 %v512, %v1264
    %v1273 = vadd.f32 %v513, %v1265
    %v1274 = vadd.f32 %v514, %v1266
    %v1275 = vadd.f32 %v515, %v1267
    %v1276 = vadd.f32 %v516, %v1268
    %v1277 = vsub.f32 %v1269, %v821
    %v1278 = vsub.f32 %v1270, %v822
    %v1279 = vsub.f32 %v1271, %v823
    %v1280 = vsub.f32 %v1272, %v824
    %v1281 = vsub.f32 %v1273, %v825
    %v1282 = vsub.f32 %v1274, %v826
    %v1283 = vsub.f32 %v1275, %v827
    %v1284 = vsub.f32 %v1276, %v828
    %v1285 = vsub.f32 %v1269, %v1133
    %v1286 = vsub.f32 %v1270, %v1134
    %v1287 = vsub.f32 %v1271, %v1135
    %v1288 = vsub.f32 %v1272, %v1136
    %v1289 = vsub.f32 %v1273, %v1137
    %v1290 = vsub.f32 %v1274, %v1138
    %v1291 = vsub.f32 %v1275, %v1139
    %v1292 = vsub.f32 %v1276, %v1140
    %v1293 = vmul.f32 %v1277, %v1277
    %v1294 = vmul.f32 %v1278, %v1278
    %v1295 = vmul.f32 %v1279, %v1279
    %v1296 = vmul.f32 %v1280, %v1280
    %v1297 = vmul.f32 %v1281, %v1281
    %v1298 = vmul.f32 %v1282, %v1282
    %v1299 = vmul.f32 %v1283, %v1283
    %v1300 = vmul.f32 %v1284, %v1284
    %v1301 = vsel %vm396, %v1293, 0.0
    %1302 = vadd.xlane.f32.xlu0 %v1301
    %v1303 = vpop.xlane.xlu0 %1302
    %v1304 = vsel %vm396, %v1294, 0.0
    %1305 = vadd.xlane.f32.xlu0 %v1304
    %v1306 = vpop.xlane.xlu0 %1305
    %v1307 = vsel %vm396, %v1295, 0.0
    %1308 = vadd.xlane.f32.xlu0 %v1307
    %v1309 = vpop.xlane.xlu0 %1308
    %v1310 = vsel %vm396, %v1296, 0.0
    %1311 = vadd.xlane.f32.xlu0 %v1310
    %v1312 = vpop.xlane.xlu0 %1311
    %v1313 = vsel %vm396, %v1297, 0.0
    %1314 = vadd.xlane.f32.xlu0 %v1313
    %v1315 = vpop.xlane.xlu0 %1314
    %v1316 = vsel %vm396, %v1298, 0.0
    %1317 = vadd.xlane.f32.xlu0 %v1316
    %v1318 = vpop.xlane.xlu0 %1317
    %v1319 = vsel %vm396, %v1299, 0.0
    %1320 = vadd.xlane.f32.xlu0 %v1319
    %v1321 = vpop.xlane.xlu0 %1320
    %v1322 = vsel %vm396, %v1300, 0.0
    %1323 = vadd.xlane.f32.xlu0 %v1322
    %v1324 = vpop.xlane.xlu0 %1323
    %v1325 = vmul.f32 %v1285, %v1285
    %v1326 = vmul.f32 %v1286, %v1286
    %v1327 = vmul.f32 %v1287, %v1287
    %v1328 = vmul.f32 %v1288, %v1288
    %v1329 = vmul.f32 %v1289, %v1289
    %v1330 = vmul.f32 %v1290, %v1290
    %v1331 = vmul.f32 %v1291, %v1291
    %v1332 = vmul.f32 %v1292, %v1292
    %v1333 = vsel %vm396, %v1325, 0.0
    %1334 = vadd.xlane.f32.xlu0 %v1333
    %v1335 = vpop.xlane.xlu0 %1334
    %v1336 = vsel %vm396, %v1326, 0.0
    %1337 = vadd.xlane.f32.xlu0 %v1336
    %v1338 = vpop.xlane.xlu0 %1337
    %v1339 = vsel %vm396, %v1327, 0.0
    %1340 = vadd.xlane.f32.xlu0 %v1339
    %v1341 = vpop.xlane.xlu0 %1340
    %v1342 = vsel %vm396, %v1328, 0.0
    %1343 = vadd.xlane.f32.xlu0 %v1342
    %v1344 = vpop.xlane.xlu0 %1343
    %v1345 = vsel %vm396, %v1329, 0.0
    %1346 = vadd.xlane.f32.xlu0 %v1345
    %v1347 = vpop.xlane.xlu0 %1346
    %v1348 = vsel %vm396, %v1330, 0.0
    %1349 = vadd.xlane.f32.xlu0 %v1348
    %v1350 = vpop.xlane.xlu0 %1349
    %v1351 = vsel %vm396, %v1331, 0.0
    %1352 = vadd.xlane.f32.xlu0 %v1351
    %v1353 = vpop.xlane.xlu0 %1352
    %v1354 = vsel %vm396, %v1332, 0.0
    %1355 = vadd.xlane.f32.xlu0 %v1354
    %v1356 = vpop.xlane.xlu0 %1355
    %v1357 = vsub.f32 %v1335, %v1303
    %v1358 = vsub.f32 %v1338, %v1306
    %v1359 = vsub.f32 %v1341, %v1309
    %v1360 = vsub.f32 %v1344, %v1312
    %v1361 = vsub.f32 %v1347, %v1315
    %v1362 = vsub.f32 %v1350, %v1318
    %v1363 = vsub.f32 %v1353, %v1321
    %v1364 = vsub.f32 %v1356, %v1324
    %v1365 = vsub.f32 0.0, %v1357
    %v1366 = vsub.f32 0.0, %v1358
    %v1367 = vsub.f32 0.0, %v1359
    %v1368 = vsub.f32 0.0, %v1360
    %v1369 = vsub.f32 0.0, %v1361
    %v1370 = vsub.f32 0.0, %v1362
    %v1371 = vsub.f32 0.0, %v1363
    %v1372 = vsub.f32 0.0, %v1364
    %v1373 = vmax.f32 %v1365, 0.0
    %v1374 = vmax.f32 %v1366, 0.0
    %v1375 = vmax.f32 %v1367, 0.0
    %v1376 = vmax.f32 %v1368, 0.0
    %v1377 = vmax.f32 %v1369, 0.0
    %v1378 = vmax.f32 %v1370, 0.0
    %v1379 = vmax.f32 %v1371, 0.0
    %v1380 = vmax.f32 %v1372, 0.0
    %vm1381 = vcmp.ne.f32.partialorder %v1365, %v1365
    %vm1382 = vcmp.ne.f32.partialorder %v1366, %v1366
    %vm1383 = vcmp.ne.f32.partialorder %v1367, %v1367
    %vm1384 = vcmp.ne.f32.partialorder %v1368, %v1368
    %vm1385 = vcmp.ne.f32.partialorder %v1369, %v1369
    %vm1386 = vcmp.ne.f32.partialorder %v1370, %v1370
    %vm1387 = vcmp.ne.f32.partialorder %v1371, %v1371
    %vm1388 = vcmp.ne.f32.partialorder %v1372, %v1372
    %v1389 = vadd.f32 %v1365, 0.0
    %v1390 = vadd.f32 %v1366, 0.0
    %v1391 = vadd.f32 %v1367, 0.0
    %v1392 = vadd.f32 %v1368, 0.0
    %v1393 = vadd.f32 %v1369, 0.0
    %v1394 = vadd.f32 %v1370, 0.0
    %v1395 = vadd.f32 %v1371, 0.0
    %v1396 = vadd.f32 %v1372, 0.0
    %v1397 = vand.u32 2147483647, %v1365
    %v1398 = vand.u32 2147483647, %v1366
    %v1399 = vand.u32 2147483647, %v1367
    %v1400 = vand.u32 2147483647, %v1368
    %v1401 = vand.u32 2147483647, %v1369
    %v1402 = vand.u32 2147483647, %v1370
    %v1403 = vand.u32 2147483647, %v1371
    %v1404 = vand.u32 2147483647, %v1372
    %v1405 = vsub.f32 0.0, %v1397
    %v1406 = vsub.f32 0.0, %v1398
    %v1407 = vsub.f32 0.0, %v1399
    %v1408 = vsub.f32 0.0, %v1400
    %v1409 = vsub.f32 0.0, %v1401
    %v1410 = vsub.f32 0.0, %v1402
    %v1411 = vsub.f32 0.0, %v1403
    %v1412 = vsub.f32 0.0, %v1404
    %v1413 = vmul.f32 %v1405, 1.442695
    %v1414 = vpow.pop %v1413
    %v1415 = vmul.f32 %v1406, 1.442695
    %v1416 = vpow.pop %v1415
    %v1417 = vmul.f32 %v1407, 1.442695
    %v1418 = vpow.pop %v1417
    %v1419 = vmul.f32 %v1408, 1.442695
    %v1420 = vpow.pop %v1419
    %v1421 = vmul.f32 %v1409, 1.442695
    %v1422 = vpow.pop %v1421
    %v1423 = vmul.f32 %v1410, 1.442695
    %v1424 = vpow.pop %v1423
    %v1425 = vmul.f32 %v1411, 1.442695
    %v1426 = vpow.pop %v1425
    %v1427 = vmul.f32 %v1412, 1.442695
    %v1428 = vpow.pop %v1427
    %v1429 = vadd.f32 %v1414, 1.0
    %v1430 = vlog2.pop %v1429
    %v1431 = vmul.f32 %v1430, 0.6931472
    %v1432 = vmul.f32 -0.5, %v1414
    %v1433 = vadd.f32 %v1432, 1.0
    %v1434 = vmul.f32 %v1433, %v1414
    %v1435 = vand.u32 2147483647, %v1414
    %vm1436 = vcmp.lt.f32.partialorder %v1435, 0.0004427343
    %v1437 = vsel %vm1436, %v1434, %v1431
    %v1438 = vadd.f32 %v1416, 1.0
    %v1439 = vlog2.pop %v1438
    %v1440 = vmul.f32 %v1439, 0.6931472
    %v1441 = vmul.f32 -0.5, %v1416
    %v1442 = vadd.f32 %v1441, 1.0
    %v1443 = vmul.f32 %v1442, %v1416
    %v1444 = vand.u32 2147483647, %v1416
    %vm1445 = vcmp.lt.f32.partialorder %v1444, 0.0004427343
    %v1446 = vsel %vm1445, %v1443, %v1440
    %v1447 = vadd.f32 %v1418, 1.0
    %v1448 = vlog2.pop %v1447
    %v1449 = vmul.f32 %v1448, 0.6931472
    %v1450 = vmul.f32 -0.5, %v1418
    %v1451 = vadd.f32 %v1450, 1.0
    %v1452 = vmul.f32 %v1451, %v1418
    %v1453 = vand.u32 2147483647, %v1418
    %vm1454 = vcmp.lt.f32.partialorder %v1453, 0.0004427343
    %v1455 = vsel %vm1454, %v1452, %v1449
    %v1456 = vadd.f32 %v1420, 1.0
    %v1457 = vlog2.pop %v1456
    %v1458 = vmul.f32 %v1457, 0.6931472
    %v1459 = vmul.f32 -0.5, %v1420
    %v1460 = vadd.f32 %v1459, 1.0
    %v1461 = vmul.f32 %v1460, %v1420
    %v1462 = vand.u32 2147483647, %v1420
    %vm1463 = vcmp.lt.f32.partialorder %v1462, 0.0004427343
    %v1464 = vsel %vm1463, %v1461, %v1458
    %v1465 = vadd.f32 %v1422, 1.0
    %v1466 = vlog2.pop %v1465
    %v1467 = vmul.f32 %v1466, 0.6931472
    %v1468 = vmul.f32 -0.5, %v1422
    %v1469 = vadd.f32 %v1468, 1.0
    %v1470 = vmul.f32 %v1469, %v1422
    %v1471 = vand.u32 2147483647, %v1422
    %vm1472 = vcmp.lt.f32.partialorder %v1471, 0.0004427343
    %v1473 = vsel %vm1472, %v1470, %v1467
    %v1474 = vadd.f32 %v1424, 1.0
    %v1475 = vlog2.pop %v1474
    %v1476 = vmul.f32 %v1475, 0.6931472
    %v1477 = vmul.f32 -0.5, %v1424
    %v1478 = vadd.f32 %v1477, 1.0
    %v1479 = vmul.f32 %v1478, %v1424
    %v1480 = vand.u32 2147483647, %v1424
    %vm1481 = vcmp.lt.f32.partialorder %v1480, 0.0004427343
    %v1482 = vsel %vm1481, %v1479, %v1476
    %v1483 = vadd.f32 %v1426, 1.0
    %v1484 = vlog2.pop %v1483
    %v1485 = vmul.f32 %v1484, 0.6931472
    %v1486 = vmul.f32 -0.5, %v1426
    %v1487 = vadd.f32 %v1486, 1.0
    %v1488 = vmul.f32 %v1487, %v1426
    %v1489 = vand.u32 2147483647, %v1426
    %vm1490 = vcmp.lt.f32.partialorder %v1489, 0.0004427343
    %v1491 = vsel %vm1490, %v1488, %v1485
    %v1492 = vadd.f32 %v1428, 1.0
    %v1493 = vlog2.pop %v1492
    %v1494 = vmul.f32 %v1493, 0.6931472
    %v1495 = vmul.f32 -0.5, %v1428
    %v1496 = vadd.f32 %v1495, 1.0
    %v1497 = vmul.f32 %v1496, %v1428
    %v1498 = vand.u32 2147483647, %v1428
    %vm1499 = vcmp.lt.f32.partialorder %v1498, 0.0004427343
    %v1500 = vsel %vm1499, %v1497, %v1494
    %v1501 = vadd.f32 %v1373, %v1437
    %v1502 = vadd.f32 %v1374, %v1446
    %v1503 = vadd.f32 %v1375, %v1455
    %v1504 = vadd.f32 %v1376, %v1464
    %v1505 = vadd.f32 %v1377, %v1473
    %v1506 = vadd.f32 %v1378, %v1482
    %v1507 = vadd.f32 %v1379, %v1491
    %v1508 = vadd.f32 %v1380, %v1500
    %v1509 = vsel %vm1381, %v1389, %v1501
    %v1510 = vsel %vm1382, %v1390, %v1502
    %v1511 = vsel %vm1383, %v1391, %v1503
    %v1512 = vsel %vm1384, %v1392, %v1504
    %v1513 = vsel %vm1385, %v1393, %v1505
    %v1514 = vsel %vm1386, %v1394, %v1506
    %v1515 = vsel %vm1387, %v1395, %v1507
    %v1516 = vsel %vm1388, %v1396, %v1508
    %v1517 = vsub.f32 0.0, %v1509
    %v1518 = vsub.f32 0.0, %v1510
    %v1519 = vsub.f32 0.0, %v1511
    %v1520 = vsub.f32 0.0, %v1512
    %v1521 = vsub.f32 0.0, %v1513
    %v1522 = vsub.f32 0.0, %v1514
    %v1523 = vsub.f32 0.0, %v1515
    %v1524 = vsub.f32 0.0, %v1516
    %v1525 = vsub.f32 0.0, %v1517
    %v1526 = vsub.f32 0.0, %v1518
    %v1527 = vsub.f32 0.0, %v1519
    %v1528 = vsub.f32 0.0, %v1520
    %v1529 = vsub.f32 0.0, %v1521
    %v1530 = vsub.f32 0.0, %v1522
    %v1531 = vsub.f32 0.0, %v1523
    %v1532 = vsub.f32 0.0, %v1524
    %v1533 = vld [vmem:[#allocation2] sm:$0x1]
    %v1534 = vmul.f32 %v1525, %v131
    %v1535 = vmul.f32 %v1526, %v132
    %v1536 = vmul.f32 %v1527, %v133
    %v1537 = vmul.f32 %v1528, %v134
    %v1538 = vmul.f32 %v1529, %v135
    %v1539 = vmul.f32 %v1530, %v136
    %v1540 = vmul.f32 %v1531, %v137
    %v1541 = vmul.f32 %v1532, %v138
    %vm1542 = vcmask 0
    %v1543 = vsel %vm1542, %v1534, 0.0
    %v1544 = vsel %vm1542, %v1535, 0.0
    %v1545 = vadd.f32 %v1543, %v1544
    %v1546 = vsel %vm1542, %v1536, 0.0
    %v1547 = vadd.f32 %v1545, %v1546
    %v1548 = vsel %vm1542, %v1537, 0.0
    %v1549 = vadd.f32 %v1547, %v1548
    %v1550 = vsel %vm1542, %v1538, 0.0
    %v1551 = vadd.f32 %v1549, %v1550
    %v1552 = vsel %vm1542, %v1539, 0.0
    %v1553 = vadd.f32 %v1551, %v1552
    %v1554 = vsel %vm1542, %v1540, 0.0
    %v1555 = vadd.f32 %v1553, %v1554
    %v1556 = vsel %vm1542, %v1541, 0.0
    %v1557 = vadd.f32 %v1555, %v1556
    %1558 = vadd.xlane.f32.xlu0 %v1557
    %v1559 = vpop.xlane.xlu0 %1558
    %v1560 = vrot.slane %v1559, 4
    %v1561 = vadd.f32 %v1559, %v1560
    %v1562 = vrot.slane %v1561, 2
    %v1563 = vadd.f32 %v1561, %v1562
    %v1564 = vrot.slane %v1563, 1
    %v1565 = vadd.f32 %v1563, %v1564
    %s1566 = vtos %v1565
    %v1567 = vstv %s1566
    %v1568 = vadd.f32 %v1533, %v1567
    %1569 = vst.msk [vmem:[#allocation2] sm:$0x1] %vm1542, %v1568
    %v1570 = vmul.f32 %v509, %v509
    %v1571 = vmul.f32 %v510, %v510
    %v1572 = vmul.f32 %v511, %v511
    %v1573 = vmul.f32 %v512, %v512
    %v1574 = vmul.f32 %v513, %v513
    %v1575 = vmul.f32 %v514, %v514
    %v1576 = vmul.f32 %v515, %v515
    %v1577 = vmul.f32 %v516, %v516
    %v1578 = vmul.f32 %v1570, %v131
    %v1579 = vmul.f32 %v1571, %v132
    %v1580 = vmul.f32 %v1572, %v133
    %v1581 = vmul.f32 %v1573, %v134
    %v1582 = vmul.f32 %v1574, %v135
    %v1583 = vmul.f32 %v1575, %v136
    %v1584 = vmul.f32 %v1576, %v137
    %v1585 = vmul.f32 %v1577, %v138
    %v1586 = vsel %vm396, %v1578, 0.0
    %v1587 = vsel %vm396, %v1579, 0.0
    %v1588 = vadd.f32 %v1586, %v1587
    %v1589 = vsel %vm396, %v1580, 0.0
    %v1590 = vadd.f32 %v1588, %v1589
    %v1591 = vsel %vm396, %v1581, 0.0
    %v1592 = vadd.f32 %v1590, %v1591
    %v1593 = vsel %vm396, %v1582, 0.0
    %v1594 = vadd.f32 %v1592, %v1593
    %v1595 = vsel %vm396, %v1583, 0.0
    %v1596 = vadd.f32 %v1594, %v1595
    %v1597 = vsel %vm396, %v1584, 0.0
    %v1598 = vadd.f32 %v1596, %v1597
    %v1599 = vsel %vm396, %v1585, 0.0
    %v1600 = vadd.f32 %v1598, %v1599
    %1601 = vadd.xlane.f32.xlu0 %v1600
    %v1602 = vpop.xlane.xlu0 %1601
    %v1603 = vrot.slane %v1602, 4
    %v1604 = vadd.f32 %v1602, %v1603
    %v1605 = vrot.slane %v1604, 2
    %v1606 = vadd.f32 %v1604, %v1605
    %v1607 = vrot.slane %v1606, 1
    %v1608 = vadd.f32 %v1606, %v1607
    %s1609 = vtos %v1608
    %v1610 = vstv %s1609
    %v1611 = vmul.f32 %v1261, %v1261
    %v1612 = vmul.f32 %v1262, %v1262
    %v1613 = vmul.f32 %v1263, %v1263
    %v1614 = vmul.f32 %v1264, %v1264
    %v1615 = vmul.f32 %v1265, %v1265
    %v1616 = vmul.f32 %v1266, %v1266
    %v1617 = vmul.f32 %v1267, %v1267
    %v1618 = vmul.f32 %v1268, %v1268
    %v1619 = vmul.f32 %v1611, %v131
    %v1620 = vmul.f32 %v1612, %v132
    %v1621 = vmul.f32 %v1613, %v133
    %v1622 = vmul.f32 %v1614, %v134
    %v1623 = vmul.f32 %v1615, %v135
    %v1624 = vmul.f32 %v1616, %v136
    %v1625 = vmul.f32 %v1617, %v137
    %v1626 = vmul.f32 %v1618, %v138
    %v1627 = vsel %vm396, %v1619, 0.0
    %v1628 = vsel %vm396, %v1620, 0.0
    %v1629 = vadd.f32 %v1627, %v1628
    %v1630 = vsel %vm396, %v1621, 0.0
    %v1631 = vadd.f32 %v1629, %v1630
    %v1632 = vsel %vm396, %v1622, 0.0
    %v1633 = vadd.f32 %v1631, %v1632
    %v1634 = vsel %vm396, %v1623, 0.0
    %v1635 = vadd.f32 %v1633, %v1634
    %v1636 = vsel %vm396, %v1624, 0.0
    %v1637 = vadd.f32 %v1635, %v1636
    %v1638 = vsel %vm396, %v1625, 0.0
    %v1639 = vadd.f32 %v1637, %v1638
    %v1640 = vsel %vm396, %v1626, 0.0
    %v1641 = vadd.f32 %v1639, %v1640
    %1642 = vadd.xlane.f32.xlu0 %v1641
    %v1643 = vpop.xlane.xlu0 %1642
    %v1644 = vrot.slane %v1643, 4
    %v1645 = vadd.f32 %v1643, %v1644
    %v1646 = vrot.slane %v1645, 2
    %v1647 = vadd.f32 %v1645, %v1646
    %v1648 = vrot.slane %v1647, 1
    %v1649 = vadd.f32 %v1647, %v1648
    %s1650 = vtos %v1649
    %v1651 = vstv %s1650
    %v1652 = vadd.f32 %v1610, %v1651
    %v1653 = vmul.f32 %v821, %v821
    %v1654 = vmul.f32 %v822, %v822
    %v1655 = vmul.f32 %v823, %v823
    %v1656 = vmul.f32 %v824, %v824
    %v1657 = vmul.f32 %v825, %v825
    %v1658 = vmul.f32 %v826, %v826
    %v1659 = vmul.f32 %v827, %v827
    %v1660 = vmul.f32 %v828, %v828
    %v1661 = vmul.f32 %v1653, %v131
    %v1662 = vmul.f32 %v1654, %v132
    %v1663 = vmul.f32 %v1655, %v133
    %v1664 = vmul.f32 %v1656, %v134
    %v1665 = vmul.f32 %v1657, %v135
    %v1666 = vmul.f32 %v1658, %v136
    %v1667 = vmul.f32 %v1659, %v137
    %v1668 = vmul.f32 %v1660, %v138
    %v1669 = vsel %vm396, %v1661, 0.0
    %v1670 = vsel %vm396, %v1662, 0.0
    %v1671 = vadd.f32 %v1669, %v1670
    %v1672 = vsel %vm396, %v1663, 0.0
    %v1673 = vadd.f32 %v1671, %v1672
    %v1674 = vsel %vm396, %v1664, 0.0
    %v1675 = vadd.f32 %v1673, %v1674
    %v1676 = vsel %vm396, %v1665, 0.0
    %v1677 = vadd.f32 %v1675, %v1676
    %v1678 = vsel %vm396, %v1666, 0.0
    %v1679 = vadd.f32 %v1677, %v1678
    %v1680 = vsel %vm396, %v1667, 0.0
    %v1681 = vadd.f32 %v1679, %v1680
    %v1682 = vsel %vm396, %v1668, 0.0
    %v1683 = vadd.f32 %v1681, %v1682
    %1684 = vadd.xlane.f32.xlu0 %v1683
    %v1685 = vpop.xlane.xlu0 %1684
    %v1686 = vrot.slane %v1685, 4
    %v1687 = vadd.f32 %v1685, %v1686
    %v1688 = vrot.slane %v1687, 2
    %v1689 = vadd.f32 %v1687, %v1688
    %v1690 = vrot.slane %v1689, 1
    %v1691 = vadd.f32 %v1689, %v1690
    %s1692 = vtos %v1691
    %v1693 = vstv %s1692
    %v1694 = vadd.f32 %v1652, %v1693
    %v1695 = vmul.f32 %v1133, %v1133
    %v1696 = vmul.f32 %v1134, %v1134
    %v1697 = vmul.f32 %v1135, %v1135
    %v1698 = vmul.f32 %v1136, %v1136
    %v1699 = vmul.f32 %v1137, %v1137
    %v1700 = vmul.f32 %v1138, %v1138
    %v1701 = vmul.f32 %v1139, %v1139
    %v1702 = vmul.f32 %v1140, %v1140
    %v1703 = vmul.f32 %v1695, %v131
    %v1704 = vmul.f32 %v1696, %v132
    %v1705 = vmul.f32 %v1697, %v133
    %v1706 = vmul.f32 %v1698, %v134
    %v1707 = vmul.f32 %v1699, %v135
    %v1708 = vmul.f32 %v1700, %v136
    %v1709 = vmul.f32 %v1701, %v137
    %v1710 = vmul.f32 %v1702, %v138
    %v1711 = vsel %vm396, %v1703, 0.0
    %v1712 = vsel %vm396, %v1704, 0.0
    %v1713 = vadd.f32 %v1711, %v1712
    %v1714 = vsel %vm396, %v1705, 0.0
    %v1715 = vadd.f32 %v1713, %v1714
    %v1716 = vsel %vm396, %v1706, 0.0
    %v1717 = vadd.f32 %v1715, %v1716
    %v1718 = vsel %vm396, %v1707, 0.0
    %v1719 = vadd.f32 %v1717, %v1718
    %v1720 = vsel %vm396, %v1708, 0.0
    %v1721 = vadd.f32 %v1719, %v1720
    %v1722 = vsel %vm396, %v1709, 0.0
    %v1723 = vadd.f32 %v1721, %v1722
    %v1724 = vsel %vm396, %v1710, 0.0
    %v1725 = vadd.f32 %v1723, %v1724
    %1726 = vadd.xlane.f32.xlu0 %v1725
    %v1727 = vpop.xlane.xlu0 %1726
    %v1728 = vrot.slane %v1727, 4
    %v1729 = vadd.f32 %v1727, %v1728
    %v1730 = vrot.slane %v1729, 2
    %v1731 = vadd.f32 %v1729, %v1730
    %v1732 = vrot.slane %v1731, 1
    %v1733 = vadd.f32 %v1731, %v1732
    %s1734 = vtos %v1733
    %v1735 = vstv %s1734
    %v1736 = vadd.f32 %v1694, %v1735
    %v1737 = vmul.f32 %v1736, 0.5
    %v1738 = vld [vmem:[#allocation3] sm:$0x1]
    %v1739 = vadd.f32 %v1738, %v1737
    %1740 = vst.msk [vmem:[#allocation3] sm:$0x1] %vm1542, %v1739
    // Predicated region
    $region46: #{tpu_custom_call.1} parent=1 // pred_check
      %p1741 = pneg %p99
    $region47: #{tpu_custom_call.1} parent=1 // pred_check_branch
      %1743 = sbr.rel (%p1741) target = $region49
    $region48: #{tpu_custom_call.1} parent=1 // pred_region
      %v1744 = vld [vmem:[#allocation2] sm:$0x1]
      %v1745 = vmul.f32 %v1744, 0.125
      %v1746 = vld [vmem:[#allocation3] sm:$0x1]
      %v1747 = vmul.f32 %v1746, 0.125
      %v1748 = vmul.f32 %v1747, 0.0001
      %v1749 = vadd.f32 %v1745, %v1748
      %1750 = vst.msk [vmem:[#allocation13] sm:$0x1] %vm1542, %v1749
    $region49: #{tpu_custom_call.1} parent=1 // pred_fallthru
      _
    // Predicated region
    $region50: #{tpu_custom_call.1} parent=1 // pred_check
      _
    $region51: #{tpu_custom_call.1} parent=1 // pred_check_branch
      %1752 = sbr.rel (0) target = $region53
    $region52: #{tpu_custom_call.1} parent=1 // pred_region
      %1754 = vsyncadd [#allocation6], 0
      %s1756 = sshll.u32 [#allocation13], 4
      %s1757 = int_to_ptr.vmem [resolvable:$true] %s1756
      %s1758 = sshll.u32 %s5, 4
      %s1759 = int_to_ptr.hbm [resolvable:$true] %s1758
      %1761 = dma.vmem_to_hbm [thread:$0]  %s1757, 16, %s1759, [#allocation6]
    $region53: #{tpu_custom_call.1} parent=1 // pred_fallthru
      _
    // Predicated region
    $region54: #{tpu_custom_call.1} parent=1 // pred_check
      _
    $region55: #{tpu_custom_call.1} parent=1 // pred_check_branch
      %1763 = sbr.rel (0) target = $region57
    $region56: #{tpu_custom_call.1} parent=1 // pred_region
      %1765 = dma.done [#allocation6], 16
    $region57: #{tpu_custom_call.1} parent=1 // pred_fallthru
      _
    %1766 = vsyncpa [#allocation5], 1
    %1767 = vsyncpa [#allocation8], 1
    %1768 = vsyncpa [#allocation11], 1
    %1769 = vsyncpa [#allocation6], 1

</llo_original>
